<compile_context>
chip_gen: v5e
topology: v5e:2x2
jax: 0.10.0
libtpu: 0.0.40
codegen_flags: <defaults>
</compile_context>

<pallas_src>
import functools

import jax
import jax.numpy as jnp
import numpy as np
from jax import lax
from jax.experimental import pallas as pl
from jax.experimental.pallas import tpu as pltpu

F32 = jnp.float32
BF16 = jnp.bfloat16
CORR_PAD = 384                      # 324 correlation channels padded to a multiple of 128
VMEM_LIMIT = 48 * 1024 * 1024       # below v7x's 64 MiB physical, above v5e/v6e defaults


def _gelu(x):
    # tanh approximation: EUP slot instead of a long VALU erf polynomial
    # (small numeric deviation from torch's exact erf GELU).
    return jax.nn.gelu(x, approximate=True)


def _round_up(x, m):
    return ((x + m - 1) // m) * m


def _pick_tile(m):
    """Prefer 256-512 M-tiles (full MXU on v6e/v7x); prefer even grid-step counts."""
    best = None
    for c in (512, 384, 256):
        if m % c == 0:
            if (m // c) % 2 == 0:
                return c
            if best is None:
                best = c
    if best is not None:
        return best
    for c in (128, 64, 32, 16, 8):
        if m % c == 0:
            return c
    return m


# ----------------------------------------------------------------------------------
# Generic bf16 matmul kernel (patch embed / to_qk / mask 1x1)
# ----------------------------------------------------------------------------------

def _mm_kernel(x_ref, w_ref, b_ref, o_ref, *, act):
    y = jnp.dot(x_ref[...].astype(BF16), w_ref[...],
                preferred_element_type=F32) + b_ref[...]
    if act == "relu":
        y = jnp.maximum(y, 0.0)
    elif act == "gelu":
        y = _gelu(y)
    o_ref[...] = y


def pallas_matmul(x, w_bf16, b=None, act=None):
    """act(x @ w + b).  x:(M,K), w:(K,N) bf16, b:(N,) or None -> (M,N) f32."""
    M, K = x.shape
    N = w_bf16.shape[1]
    b2 = jnp.zeros((1, N), F32) if b is None else b.reshape(1, N).astype(F32)
    tm = _pick_tile(M)
    tn = N          # weight fully resident at these widths
    grid = (M // tm, N // tn)
    return pl.pallas_call(
        functools.partial(_mm_kernel, act=act),
        out_shape=jax.ShapeDtypeStruct((M, N), F32),
        grid=grid,
        in_specs=[pl.BlockSpec((tm, K), lambda i, j: (i, 0)),
                  pl.BlockSpec((K, tn), lambda i, j: (0, j)),
                  pl.BlockSpec((1, tn), lambda i, j: (0, j))],
        out_specs=pl.BlockSpec((tm, tn), lambda i, j: (i, j)),
        compiler_params=pltpu.CompilerParams(
            dimension_semantics=("parallel", "parallel"),
            vmem_limit_bytes=VMEM_LIMIT),
    )(x, w_bf16, b2)


# ----------------------------------------------------------------------------------
# Fused SK-block kernels (stage 1: ffn1 + residual gelu + k=1 depthwise FMA)
# ----------------------------------------------------------------------------------

def _sk_pre_kernel(x_ref, w1_ref, b1_ref, w2_ref, b2_ref, dw_ref, db_ref, o_ref):
    xb = x_ref[...]                                     # bf16 activations
    x = xb.astype(F32)
    h = _gelu(jnp.dot(xb, w1_ref[...], preferred_element_type=F32) + b1_ref[...])
    y = jnp.dot(h.astype(BF16), w2_ref[...], preferred_element_type=F32) + b2_ref[...]
    x = _gelu(x + y)                                    # gelu(x + ffn1(x))
    x = _gelu(x + x * dw_ref[...] + db_ref[...])        # k=1 depthwise as elementwise FMA
    o_ref[...] = x.astype(o_ref.dtype)


def _sk_pre_flow_kernel(f_ref, pw_ref, pb_ref, w1_ref, b1_ref, w2_ref, b2_ref,
                        dw_ref, db_ref, o_ref):
    # convf1 (2->128) folded in as a broadcast FMA (K=2 would waste the MXU)
    fl = f_ref[...]
    x = fl[:, 0:1] * pw_ref[0:1, :] + fl[:, 1:2] * pw_ref[1:2, :] + pb_ref[...]
    h = _gelu(jnp.dot(x.astype(BF16), w1_ref[...],
                      preferred_element_type=F32) + b1_ref[...])
    y = jnp.dot(h.astype(BF16), w2_ref[...], preferred_element_type=F32) + b2_ref[...]
    x = _gelu(x + y)
    x = _gelu(x + x * dw_ref[...] + db_ref[...])
    o_ref[...] = x.astype(o_ref.dtype)


def sk_pre(p, x2d, pre=None):
    M = x2d.shape[0]
    cinp = p["ffn1_w2"].shape[1]
    hidp = p["ffn1_w1"].shape[1]
    tm = _pick_tile(M)
    assert M % tm == 0
    grid = (M // tm,)

    def w_spec(shape):
        return pl.BlockSpec(shape, lambda i, _s=shape: tuple(0 for _ in _s))

    if pre is None:
        kern = _sk_pre_kernel
        in_specs = [pl.BlockSpec((tm, cinp), lambda i: (i, 0))]
        args = [x2d]
    else:
        kern = _sk_pre_flow_kernel
        in_specs = [pl.BlockSpec((tm, x2d.shape[1]), lambda i: (i, 0)),
                    w_spec((x2d.shape[1], cinp)), w_spec((1, cinp))]
        args = [x2d, pre[0], pre[1]]
    in_specs += [w_spec((cinp, hidp)), w_spec((1, hidp)),
                 w_spec((hidp, cinp)), w_spec((1, cinp)),
                 w_spec((1, cinp)), w_spec((1, cinp))]
    args += [p["ffn1_w1"], p["ffn1_b1"], p["ffn1_w2"], p["ffn1_b2"],
             p["dw1_w"], p["dw1_b"]]
    return pl.pallas_call(
        kern,
        out_shape=jax.ShapeDtypeStruct((M, cinp), BF16),
        grid=grid,
        in_specs=in_specs,
        out_specs=pl.BlockSpec((tm, cinp), lambda i: (i, 0)),
        compiler_params=pltpu.CompilerParams(
            dimension_semantics=("parallel",),
            vmem_limit_bytes=VMEM_LIMIT),
    )(*args)


# ----------------------------------------------------------------------------------
# Fused SK-block kernels (stage 2: gelu(x+dw) + pw + ffn2)
# ----------------------------------------------------------------------------------

def _sk_post_kernel(x_ref, d_ref, pw_w_ref, pw_b_ref, f1w_ref, f1b_ref,
                    f2w_ref, f2b_ref, o_ref, *, final_gelu):
    x = _gelu(x_ref[...].astype(F32) + d_ref[...].astype(F32))   # gelu(x + depthwise_k(x))
    y = jnp.dot(x.astype(BF16), pw_w_ref[...],
                preferred_element_type=F32) + pw_b_ref[...]
    x = _gelu(x + y)                                             # gelu(x + pw(x))
    h = _gelu(jnp.dot(x.astype(BF16), f1w_ref[...],
                      preferred_element_type=F32) + f1b_ref[...])
    out = jnp.dot(h.astype(BF16), f2w_ref[...],
                  preferred_element_type=F32) + f2b_ref[...]
    if final_gelu:
        out = _gelu(out)
    o_ref[...] = out


def sk_post(p, x2d, d2d, final_gelu=False):
    M, cinp = x2d.shape
    hidp = p["ffn2_w1"].shape[1]
    coutp = p["ffn2_w2"].shape[1]
    tm = _pick_tile(M)
    assert M % tm == 0
    grid = (M // tm,)

    def w_spec(shape):
        return pl.BlockSpec(shape, lambda i, _s=shape: tuple(0 for _ in _s))

    return pl.pallas_call(
        functools.partial(_sk_post_kernel, final_gelu=final_gelu),
        out_shape=jax.ShapeDtypeStruct((M, coutp), F32),
        grid=grid,
        in_specs=[pl.BlockSpec((tm, cinp), lambda i: (i, 0)),
                  pl.BlockSpec((tm, cinp), lambda i: (i, 0)),
                  w_spec((cinp, cinp)), w_spec((1, cinp)),
                  w_spec((cinp, hidp)), w_spec((1, hidp)),
                  w_spec((hidp, coutp)), w_spec((1, coutp))],
        out_specs=pl.BlockSpec((tm, coutp), lambda i: (i, 0)),
        compiler_params=pltpu.CompilerParams(
            dimension_semantics=("parallel",),
            vmem_limit_bytes=VMEM_LIMIT),
    )(x2d, d2d, p["pw_w"], p["pw_b"], p["ffn2_w1"], p["ffn2_b1"],
      p["ffn2_w2"], p["ffn2_b2"])


# ----------------------------------------------------------------------------------
# Depthwise KxK conv (15x15 / 7x7) -- row-band shift-and-accumulate kernel
# ----------------------------------------------------------------------------------

def _dw_kernel(x_ref, w_ref, b_ref, o_ref, *, kh, kw, rb):
    H = o_ref.shape[1]
    W = o_ref.shape[2]
    C = o_ref.shape[3]

    def blk_body(bi, carry):
        h0 = pl.multiple_of(bi * rb, rb)
        acc0 = jnp.zeros((rb, W, C), F32) + b_ref[...]

        def tap_body(di, acc):
            # load the (rb, Wp, C) input row-band ONCE per kernel row; the kw shifted
            # taps below are value slices (sublane shifts), not extra VMEM loads.
            rows = x_ref[0, pl.ds(h0 + di, rb), :, :].astype(F32)
            wrow = w_ref[di]                                        # (kw, C)
            for dj in range(kw):                                    # static unroll
                acc = acc + rows[:, dj:dj + W, :] * wrow[dj:dj + 1, :]
            return acc

        acc = lax.fori_loop(0, kh, tap_body, acc0)
        o_ref[0, pl.ds(h0, rb), :, :] = acc.astype(o_ref.dtype)     # one row-band store
        return carry

    lax.fori_loop(0, H // rb, blk_body, 0)


def depthwise_conv_pallas(x, w, b):
    """Depthwise KxK conv, stride 1, SAME padding.  x:(N,H,W,C) bf16, w:(k,k,C), b:(1,C)."""
    N, H, W, C = x.shape
    kh, kw = w.shape[0], w.shape[1]
    ph, pw_ = kh // 2, kw // 2
    xp = jnp.pad(x, ((0, 0), (ph, ph), (pw_, pw_), (0, 0)))
    Hp, Wp = H + 2 * ph, W + 2 * pw_
    rb = 8
    while H % rb:
        rb //= 2
    # channel-band grid axis keeps >2 parallel steps for v7x's two TensorCores
    nb = 1
    if N < 4 and C % 128 == 0 and C > 128:
        for cand in (2, 4, 3, 5):
            if (C // 128) % cand == 0:
                nb = cand
                break
    cb = C // nb
    return pl.pallas_call(
        functools.partial(_dw_kernel, kh=kh, kw=kw, rb=rb),
        out_shape=jax.ShapeDtypeStruct((N, H, W, C), x.dtype),
        grid=(N, nb),
        in_specs=[pl.BlockSpec((1, Hp, Wp, cb), lambda i, j: (i, 0, 0, j)),
                  pl.BlockSpec((kh, kw, cb), lambda i, j: (0, 0, j)),
                  pl.BlockSpec((1, cb), lambda i, j: (0, j))],
        out_specs=pl.BlockSpec((1, H, W, cb), lambda i, j: (i, 0, 0, j)),
        compiler_params=pltpu.CompilerParams(
            dimension_semantics=("parallel", "parallel"),
            vmem_limit_bytes=VMEM_LIMIT),
    )(xp, w, b)


def sk_block(p, x_nhwc, pre=None, final_gelu=False, cout=None):
    """SKBlock: fused ffn1/k1-dw kernel -> Pallas depthwise -> fused pw/ffn2 kernel."""
    N, H, W, Cin = x_nhwc.shape
    cinp = p["ffn1_w2"].shape[1]
    M = N * H * W
    if pre is None:
        x_in = x_nhwc.reshape(M, Cin).astype(BF16)     # bf16 activations between stages
    else:
        x_in = x_nhwc.reshape(M, Cin)                  # flow stays f32 (tiny)
    x2 = sk_pre(p, x_in, pre=pre)                                            # (M, cinp) bf16
    d = depthwise_conv_pallas(x2.reshape(N, H, W, cinp), p["dwk_w"], p["dwk_b"])
    out = sk_post(p, x2, d.reshape(M, cinp), final_gelu=final_gelu)          # (M, coutp) f32
    if cout is not None and out.shape[1] != cout:
        out = out[:, :cout]                            # drop zero-padded output channels
    return out.reshape(N, H, W, out.shape[1])


# ----------------------------------------------------------------------------------
# Correlation volume (tiled over query rows) + separable bilinear lookup
# ----------------------------------------------------------------------------------

def _corr_kernel(f1_ref, f2_ref, o_ref, *, inv_sqrt_dim):
    a = f1_ref[0]                                       # (tm, C) bf16
    b = f2_ref[0]                                       # (HW, C) bf16
    c = lax.dot_general(a, b, (((1,), (1,)), ((), ())),
                        preferred_element_type=F32)
    o_ref[0] = c * inv_sqrt_dim


def compute_corr(f1, f2, tm=128):
    """f1,f2: (P, HW, C) bf16 -> (P, HW, HW) f32 scaled by 1/sqrt(C)."""
    P, HW, C = f1.shape
    tm = min(tm, HW)
    assert HW % tm == 0
    return pl.pallas_call(
        functools.partial(_corr_kernel, inv_sqrt_dim=float(1.0 / np.sqrt(C))),
        out_shape=jax.ShapeDtypeStruct((P, HW, HW), F32),
        grid=(P, HW // tm),
        in_specs=[pl.BlockSpec((1, tm, C), lambda i, j: (i, j, 0)),
                  pl.BlockSpec((1, HW, C), lambda i, j: (i, 0, 0))],
        out_specs=pl.BlockSpec((1, tm, HW), lambda i, j: (i, j, 0)),
        compiler_params=pltpu.CompilerParams(
            dimension_semantics=("parallel", "parallel"),
            vmem_limit_bytes=VMEM_LIMIT),
    )(f1, f2)


def build_pyramid(corr, num_levels=4):
    pyr = [corr]
    for _ in range(num_levels - 1):
        q, h, w = pyr[-1].shape
        assert h % 2 == 0 and w % 2 == 0
        pyr.append(pyr[-1].reshape(q, h // 2, 2, w // 2, 2).mean(axis=(2, 4)))
    return pyr


def _corr_lookup_kernel(coords_ref, c0_ref, c1_ref, c2_ref, c3_ref, o_ref, *,
                        radius, out_width):
    # Bilinear grid_sample(zeros padding, align_corners) over a separable 9x9 delta grid:
    # per query, two small interpolation contractions per pyramid level -- no gathers.
    nt = 2 * radius + 1
    xy = coords_ref[...]                                      # (tq, 2) (x, y)
    tq = xy.shape[0]
    db = lax.broadcasted_iota(F32, (1, nt), 1) - float(radius)
    blocks = []
    for lvl, c_ref in enumerate((c0_ref, c1_ref, c2_ref, c3_ref)):
        h, w = c_ref.shape[1], c_ref.shape[2]
        img = c_ref[...]                                      # (tq, h, w)
        inv = 1.0 / float(2 ** lvl)
        x = xy[:, 0:1] * inv
        y = xy[:, 1:2] * inv
        row = lax.broadcasted_iota(F32, (1, 1, h), 2)
        col = lax.broadcasted_iota(F32, (1, w), 1)
        wy = jnp.maximum(0.0, 1.0 - jnp.abs((y + db)[:, :, None] - row))   # (tq, nt, h)
        for a in range(nt):
            xa = x + (float(a) - float(radius))               # (tq, 1)
            wxa = jnp.maximum(0.0, 1.0 - jnp.abs(xa - col))   # (tq, w)
            m_a = jnp.sum(wxa[:, None, :] * img, axis=-1)     # (tq, h)
            blocks.append(jnp.sum(wy * m_a[:, None, :], axis=-1))   # (tq, nt)
    pad = out_width - 4 * nt * nt
    if pad > 0:
        blocks.append(jnp.zeros((tq, pad), F32))
    # single lane-dense store instead of 36 narrow masked stores
    o_ref[...] = jnp.concatenate(blocks, axis=-1)


def corr_lookup(pyramid, coords_flat, radius=4, out_width=CORR_PAD, tq=256):
    """pyramid: 4 x (Q, h, w); coords_flat: (Q, 2) -> (Q, out_width) (padded past 324)."""
    Q = coords_flat.shape[0]
    tq = min(tq, Q)
    assert Q % tq == 0
    in_specs = [pl.BlockSpec((tq, 2), lambda i: (i, 0))]
    for lvl in range(4):
        h, w = pyramid[lvl].shape[1], pyramid[lvl].shape[2]
        in_specs.append(pl.BlockSpec((tq, h, w), lambda i: (i, 0, 0)))
    return pl.pallas_call(
        functools.partial(_corr_lookup_kernel, radius=radius, out_width=out_width),
        out_shape=jax.ShapeDtypeStruct((Q, out_width), F32),
        grid=(Q // tq,),
        in_specs=in_specs,
        out_specs=pl.BlockSpec((tq, out_width), lambda i: (i, 0)),
        compiler_params=pltpu.CompilerParams(dimension_semantics=("parallel",)),
    )(coords_flat, *pyramid)


# ----------------------------------------------------------------------------------
# Fused Aggregate attention (to_v projection + softmax attention + residual),
# tiled over query rows
# ----------------------------------------------------------------------------------

def _agg_kernel(q_ref, k_ref, ffull_ref, ftile_ref, wv_ref, o_ref, *, scale):
    q = q_ref[0]                                              # (tq, D) bf16
    k = k_ref[0]                                              # (N, D) bf16
    f_full = ffull_ref[0]                                     # (N, D) f32
    v = jnp.dot(f_full.astype(BF16), wv_ref[...], preferred_element_type=F32)
    s = lax.dot_general(q, k, (((1,), (1,)), ((), ())),
                        preferred_element_type=F32) * scale   # (tq, N)
    s = s - jnp.max(s, axis=-1, keepdims=True)
    e = jnp.exp(s)
    p = e * pl.reciprocal(jnp.sum(e, axis=-1, keepdims=True), approx=True)
    o = jnp.dot(p.astype(BF16), v.astype(BF16), preferred_element_type=F32)
    o_ref[0] = ftile_ref[0] + o                               # residual (gamma folded in Wv)


def aggregate(p, querys, keys, fmap, scale, tq=128):
    BT, H, W, D = fmap.shape
    N = H * W
    tq = min(tq, N)
    assert N % tq == 0
    wv = (p["to_v_w"] * p["gamma"]).astype(BF16)   # gamma folded into Wv (linear)
    q = querys.reshape(BT, N, D).astype(BF16)
    k = keys.reshape(BT, N, D).astype(BF16)
    f = fmap.reshape(BT, N, D)
    tile_spec = pl.BlockSpec((1, tq, D), lambda i, j: (i, j, 0))
    full_spec = pl.BlockSpec((1, N, D), lambda i, j: (i, 0, 0))
    out = pl.pallas_call(
        functools.partial(_agg_kernel, scale=float(scale)),
        out_shape=jax.ShapeDtypeStruct((BT, N, D), F32),
        grid=(BT, N // tq),
        in_specs=[tile_spec, full_spec, full_spec, tile_spec,
                  pl.BlockSpec((D, D), lambda i, j: (0, 0))],
        out_specs=tile_spec,
        compiler_params=pltpu.CompilerParams(
            dimension_semantics=("parallel", "parallel"),
            vmem_limit_bytes=VMEM_LIMIT),
    )(q, k, f, f, wv)
    return out.reshape(BT, H, W, D)


# ----------------------------------------------------------------------------------
# JAX glue
# ----------------------------------------------------------------------------------

def conv3x3(x, w, b):
    # TODO(synk): 3x3 dense conv of the mask head left to XLA (single small conv).
    y = lax.conv_general_dilated(x, w, (1, 1), [(1, 1), (1, 1)],
                                 dimension_numbers=("NHWC", "HWIO", "NHWC"))
    return y + b


def patch_embed(p, x, ps=8):
    # TODO(synk): stub for the Twins-SVT backbone (kept: stride-8, 256-ch output).
    B, T, H, W, C = x.shape
    Hc, Wc = H // ps, W // ps
    patches = (x.reshape(B * T, Hc, ps, Wc, ps, C)
                 .transpose(0, 1, 3, 2, 4, 5)
                 .reshape(B * T * Hc * Wc, ps * ps * C))
    y = pallas_matmul(patches, p["w"], p["b"])
    return y.reshape(B, T, Hc, Wc, -1)


def coords_grid(batch, ht, wd):
    yy, xx = jnp.meshgrid(jnp.arange(ht), jnp.arange(wd), indexing="ij")
    coords = jnp.stack([xx, yy], axis=-1).astype(F32)     # (H,W,2) (x,y)
    return jnp.broadcast_to(coords[None], (batch, ht, wd, 2))


def sk_motion_encoder(p, flow, corr):
    cor = sk_block(p["convc1"], corr, final_gelu=True)                       # 384p -> 256
    cor = sk_block(p["convc2"], cor)                                         # 256 -> 192
    flo = sk_block(p["convf2"], flow, pre=(p["convf1_w"], p["convf1_b"]))    # 2 -> 128 -> 64
    out = sk_block(p["conv"], jnp.concatenate([cor, flo], axis=-1), cout=126)
    return jnp.concatenate([out, flow], axis=-1)                             # 128


def attention_qk(p, inps):
    N, H, W, C = inps.shape
    qk = pallas_matmul(inps.reshape(N * H * W, C), p["to_qk_w"])   # bias=False
    qk = qk.reshape(N, H, W, -1)
    return qk[..., :128], qk[..., 128:]


def mask_head(p, nets):
    h = jnp.maximum(conv3x3(nets, p["mask_w1"], p["mask_b1"]), 0.0)
    N, H, W, C = h.shape
    y = pallas_matmul(h.reshape(N * H * W, C), p["mask_w2"], p["mask_b2"])
    y = y[:, :8 * 8 * 9]                           # drop zero-padded output columns
    return y.reshape(N, H, W, -1)


def update_block(p, nets, inps, corrs, flows, querys, keys, T):
    BT, H, W, _ = nets.shape
    B = BT // T
    mf = sk_motion_encoder(p["encoder"], flows, corrs)                    # (BT,H,W,128)
    mf_g = aggregate(p["agg"], querys, keys, mf, scale=128 ** (-0.5))     # (BT,H,W,128)
    mf_t = mf   # TemporalLayer2 is an exact identity (zero_module) -> same tensor
    cat = jnp.concatenate([nets, inps, mf, mf_g, mf_t], axis=-1)          # 640
    nets = sk_block(p["gru"], cat)                                        # 640 -> 128

    nets_b = (nets.reshape(B, T, H, W, 128)
                  .transpose(0, 2, 3, 1, 4)
                  .reshape(B, H, W, T * 128))
    delta = sk_block(p["flow_head"], nets_b, cout=2 * T)                  # (B,H,W,2T)
    delta_flows = delta.reshape(B, H, W, T, 2).transpose(0, 3, 1, 2, 4)   # (B,T,H,W,2)

    masks = 0.25 * mask_head(p["mask"], nets)                             # (BT,H,W,576)
    masks = masks.reshape(B, T, H, W, -1)
    return nets, masks, delta_flows


def upsample_flow(flow_nhwc, mask_nhwc, ratio=8):
    """Convex upsampling (F.unfold + softmax over 9 taps), returns NCHW."""
    N, H, W, _ = flow_nhwc.shape
    flow = jnp.transpose(flow_nhwc, (0, 3, 1, 2))          # (N,2,H,W)
    mask = jnp.transpose(mask_nhwc, (0, 3, 1, 2))          # (N,9*r*r,H,W)
    mask = mask.reshape(N, 1, 9, ratio, ratio, H, W)
    mask = jax.nn.softmax(mask, axis=2)
    f = ratio * flow
    fp = jnp.pad(f, ((0, 0), (0, 0), (1, 1), (1, 1)))
    patches = [fp[:, :, di:di + H, dj:dj + W] for di in range(3) for dj in range(3)]
    up_flow = jnp.stack(patches, axis=2).reshape(N, 2, 9, 1, 1, H, W)
    up = jnp.sum(mask * up_flow, axis=2)
    up = jnp.transpose(up, (0, 1, 4, 2, 5, 3))
    return up.reshape(N, 2, ratio * H, ratio * W)


# ----------------------------------------------------------------------------------
# Parameter init (deterministic, synthetic; padded to lane-friendly widths)
# ----------------------------------------------------------------------------------

class KeyGen:
    def __init__(self, key):
        self.key = key
        self.i = 0

    def __call__(self):
        self.i += 1
        return jax.random.fold_in(self.key, self.i)


def w_init(kg, shape, fan_in):
    return (jax.random.normal(kg(), shape, F32) / np.sqrt(fan_in)).astype(F32)


def _pad2(w, rows, cols):
    out = jnp.zeros((rows, cols), F32)
    return out.at[:w.shape[0], :w.shape[1]].set(w)


def _pad_last(w, c):
    out = jnp.zeros(w.shape[:-1] + (c,), F32)
    return out.at[..., :w.shape[-1]].set(w)


def init_sk(kg, cin, cout, k_conv, cin_pad=None, cout_pad=None):
    cinp = cin if cin_pad is None else cin_pad
    hid = int(1.5 * cin)
    hidp = _round_up(hid, 128)
    coutp = cout if cout_pad is None else cout_pad
    k1 = [k for k in k_conv if k == 1]
    kbig = [k for k in k_conv if k > 1]
    assert len(k1) == 1 and len(kbig) == 1     # StreamFlow uses k_conv = [1, K]
    K = kbig[0]
    # zero padded rows/channels -> padded lanes never leak into the real outputs
    return {
        "ffn1_w1": _pad2(w_init(kg, (cin, hid), cin), cinp, hidp).astype(BF16),
        "ffn1_b1": jnp.zeros((1, hidp), F32),
        "ffn1_w2": _pad2(w_init(kg, (hid, cin), hid), hidp, cinp).astype(BF16),
        "ffn1_b2": jnp.zeros((1, cinp), F32),
        "dw1_w": _pad2(w_init(kg, (1, cin), 1), 1, cinp),
        "dw1_b": jnp.zeros((1, cinp), F32),
        "dwk_w": _pad_last(w_init(kg, (K, K, cin), K * K), cinp),
        "dwk_b": jnp.zeros((1, cinp), F32),
        "pw_w": _pad2(w_init(kg, (cin, cin), cin), cinp, cinp).astype(BF16),
        "pw_b": jnp.zeros((1, cinp), F32),
        "ffn2_w1": _pad2(w_init(kg, (cin, hid), cin), cinp, hidp).astype(BF16),
        "ffn2_b1": jnp.zeros((1, hidp), F32),
        "ffn2_w2": _pad2(w_init(kg, (hid, cout), hid), hidp, coutp).astype(BF16),
        "ffn2_b2": jnp.zeros((1, coutp), F32),
    }


def init_params(key, ps=8, in_chans=3):
    kg = KeyGen(key)
    pc = ps * ps * in_chans
    cor_planes = 4 * (2 * 4 + 1) ** 2   # 324 (padded to CORR_PAD=384 in activations)
    return {
        "fnet": {"w": w_init(kg, (pc, 256), pc).astype(BF16),
                 "b": jnp.zeros((256,), F32)},
        "cnet": {"w": w_init(kg, (pc, 256), pc).astype(BF16),
                 "b": jnp.zeros((256,), F32)},
        "att": {"to_qk_w": w_init(kg, (128, 256), 128).astype(BF16)},
        "update": {
            "encoder": {
                "convc1": init_sk(kg, cor_planes, 256, [1, 15], cin_pad=CORR_PAD),
                "convc2": init_sk(kg, 256, 192, [1, 15]),
                "convf1_w": w_init(kg, (2, 128), 2),
                "convf1_b": jnp.zeros((1, 128), F32),
                "convf2": init_sk(kg, 128, 64, [1, 15]),
                "conv": init_sk(kg, 64 + 192, 126, [1, 15], cout_pad=128),
            },
            "agg": {"to_v_w": w_init(kg, (128, 128), 128),
                    "gamma": jnp.zeros((), F32)},
            "gru": init_sk(kg, 128 * 5, 128, [1, 7]),
            "mask": {
                "mask_w1": w_init(kg, (3, 3, 128, 256), 9 * 128),
                "mask_b1": jnp.zeros((256,), F32),
                # 576 -> 640 output pad for a lane-dense store (sliced back in mask_head)
                "mask_w2": _pad2(w_init(kg, (256, 8 * 8 * 9), 256), 256, 640).astype(BF16),
                "mask_b2": jnp.zeros((640,), F32),
            },
            "flow_head": init_sk(kg, 128 * 3, 2 * 3, [1, 15], cout_pad=128),
        },
    }


# ----------------------------------------------------------------------------------
# Full StreamFlowT4 forward (test_mode=True, flow_init=None)
# ----------------------------------------------------------------------------------

def streamflow_forward(params, images, iters=2, ratio=8):
    """images: (B, T, 3, H, W) NCHW, T=4.  Returns T-1 flow predictions, each (B,2,H,W)."""
    B, T, C, H, W = images.shape
    x = jnp.transpose(images, (0, 1, 3, 4, 2)).astype(F32)       # NHWC

    fmaps = patch_embed(params["fnet"], x, ps=ratio)             # (B,T,Hc,Wc,256)
    cnets = patch_embed(params["cnet"], x[:, :T - 1], ps=ratio)  # (B,T-1,Hc,Wc,256)
    Hc, Wc = H // ratio, W // ratio
    P = T - 1
    HWc = Hc * Wc

    # batched correlation volumes (pairs stacked pair-major, batch-minor), bf16 features
    f1 = jnp.transpose(fmaps[:, :P], (1, 0, 2, 3, 4)).reshape(P * B, HWc, 256).astype(BF16)
    f2 = jnp.transpose(fmaps[:, 1:], (1, 0, 2, 3, 4)).reshape(P * B, HWc, 256).astype(BF16)
    corr0 = compute_corr(f1, f2).reshape(P * B * HWc, Hc, Wc)
    pyramid = build_pyramid(corr0)

    coords0 = coords_grid(B, Hc, Wc)
    coords1 = [coords0 for _ in range(P)]

    nets = jnp.tanh(cnets[..., :128]).reshape(B * P, Hc, Wc, 128)
    inps = jnp.maximum(cnets[..., 128:], 0.0).reshape(B * P, Hc, Wc, 128)
    querys, keys = attention_qk(params["att"], inps)

    preds = [None] * P
    for _ in range(iters):
        coords_all = jnp.stack(coords1, axis=0).reshape(P * B * HWc, 2)
        corrs_q = corr_lookup(pyramid, coords_all)                    # (Q, 384)
        corrs = (corrs_q.reshape(P, B, Hc, Wc, -1)
                        .transpose(1, 0, 2, 3, 4)
                        .reshape(B * P, Hc, Wc, -1))
        flows = jnp.stack([coords1[i] - coords0 for i in range(P)], axis=1)
        flows = flows.reshape(B * P, Hc, Wc, 2)

        nets, up_masks, delta_flows = update_block(
            params["update"], nets, inps, corrs, flows, querys, keys, T=P)

        coords1 = [coords1[i] + delta_flows[:, i] for i in range(P)]
        for i in range(P):
            preds[i] = upsample_flow(coords1[i] - coords0, up_masks[:, i], ratio=ratio)
    return preds


# ----------------------------------------------------------------------------------

if __name__ == "__main__":
    key = jax.random.PRNGKey(0)
    pkey, xkey = jax.random.split(key)

    B, T, C, H, W = 1, 4, 3, 128, 128      # T=4 -> 3 flow pairs (StreamFlowT4)
    params = init_params(pkey)
    images = jax.random.normal(xkey, (B, T, C, H, W), F32)

    preds = streamflow_forward(params, images, iters=2)
    for pr in preds:
        jax.block_until_ready(pr)
        assert pr.shape == (B, 2, H, W), pr.shape
        assert bool(jnp.all(jnp.isfinite(pr)))
    print("KERNEL_OK")
</pallas_src>

<mosaic_0001>
module attributes {stable_mosaic.version = 11 : i64} {
  func.func @_mm_kernel(%arg0: i32, %arg1: i32, %arg2: memref<512x192xf32, #tpu.memory_space<vmem>>, %arg3: memref<192x256xbf16, #tpu.memory_space<vmem>>, %arg4: memref<1x256xf32, #tpu.memory_space<vmem>>, %arg5: memref<512x256xf32, #tpu.memory_space<vmem>>) attributes {dimension_semantics = [#tpu.dimension_semantics<parallel>, #tpu.dimension_semantics<parallel>], iteration_bounds = array<i64: 2, 1>, scalar_prefetch = 0 : i64, scratch_operands = 0 : i64, tpu.core_type = #tpu.core_type<tc>, window_params = [{transform_indices = @transform_0, window_bounds = array<i64: 512, 192>}, {transform_indices = @transform_1, window_bounds = array<i64: 192, 256>}, {transform_indices = @transform_2, window_bounds = array<i64: 1, 256>}, {transform_indices = @transform_3, window_bounds = array<i64: 512, 256>}]} {
    %c0 = arith.constant 0 : index
    %c0_0 = arith.constant 0 : index
    %0 = vector.load %arg2[%c0, %c0_0] : memref<512x192xf32, #tpu.memory_space<vmem>>, vector<512x192xf32>
    %1 = arith.truncf %0 : vector<512x192xf32> to vector<512x192xbf16>
    %c0_1 = arith.constant 0 : index
    %c0_2 = arith.constant 0 : index
    %2 = vector.load %arg3[%c0_1, %c0_2] : memref<192x256xbf16, #tpu.memory_space<vmem>>, vector<192x256xbf16>
    %cst = arith.constant dense<0.000000e+00> : vector<512x256xf32>
    %3 = tpu.matmul %1, %2, %cst {dimension_numbers = #tpu.dot_dimension_numbers<[1], [0], [0], [1], [0, 0, 1, 1], [], []>} : vector<512x192xbf16>, vector<192x256xbf16>, vector<512x256xf32> -> vector<512x256xf32>
    %c0_3 = arith.constant 0 : index
    %c0_4 = arith.constant 0 : index
    %4 = vector.load %arg4[%c0_3, %c0_4] : memref<1x256xf32, #tpu.memory_space<vmem>>, vector<1x256xf32>
    %5 = vector.broadcast %4 : vector<1x256xf32> to vector<512x256xf32>
    %6 = arith.addf %3, %5 : vector<512x256xf32>
    %c0_5 = arith.constant 0 : index
    %c0_6 = arith.constant 0 : index
    %7 = vector.load %arg5[%c0_5, %c0_6] : memref<512x256xf32, #tpu.memory_space<vmem>>, vector<512x256xf32>
    tpu.vector_store %arg5[%c0_5, %c0_6], %6 {strides = array<i32>} : memref<512x256xf32, #tpu.memory_space<vmem>>, vector<512x256xf32>,
    return
  }
  func.func @transform_0(%arg0: i32, %arg1: i32) -> (i32, i32) {
    %c0_i32 = arith.constant 0 : i32
    %c0_i32_0 = arith.constant 0 : i32
    return %arg0, %c0_i32 : i32, i32
  }
  func.func @transform_1(%arg0: i32, %arg1: i32) -> (i32, i32) {
    %c0_i32 = arith.constant 0 : i32
    %c0_i32_0 = arith.constant 0 : i32
    return %c0_i32, %arg1 : i32, i32
  }
  func.func @transform_2(%arg0: i32, %arg1: i32) -> (i32, i32) {
    %c0_i32 = arith.constant 0 : i32
    %c0_i32_0 = arith.constant 0 : i32
    return %c0_i32, %arg1 : i32, i32
  }
  func.func @transform_3(%arg0: i32, %arg1: i32) -> (i32, i32) {
    %c0_i32 = arith.constant 0 : i32
    return %arg0, %arg1 : i32, i32
  }
}

</mosaic_0001>

<llo_original>
// kernel: tpu_custom_call.1
$region0: #{tpu_custom_call.1}
  #allocation0 [shape = 'u32[]', space=smem, size = 0x4, offset = 0x4, fixed_abs, tag = 'smem constant byte address 0x4 - core index']
  #allocation1 [shape = 'u32[72,128]{1,0:T(1,128)}', space=vmem, size = 0x9000, scoped, tag = 'internal scratch']
  %s0 = inlined_call_operand.vmem [shape: f32[1024,192], index: 0, kind: input, shape index: {}]
  %s1 = inlined_call_operand.vmem [shape: bf16[192,256], index: 1, kind: input, shape index: {}]
  %s2 = inlined_call_operand.vmem [shape: f32[1,256], index: 2, kind: input, shape index: {}]
  %s3 = inlined_call_operand.hbm [shape: f32[1024,256], index: 3, kind: output, shape index: {}]
  %s4 = sld [smem:[#allocation0]]
  $region45: #{tpu_custom_call.1} parent=0
    _
  %s6 = ssub.s32 1, %s4
  %s7 = scalar_select 0, %s6, %s4
  $region1: #{tpu_custom_call.1} parent=0
    #allocation2 [shape = 'u8[1048576]{0}', space=vmem, size = 0x100000, scoped, tag = 'output window, operand 0']
    #allocation3 [shape = 's32[2]{0}', space=sflag, size = 0x8, scoped, tag = 'scoped memory for tpu_custom_call.1']
    %8 = vsyncpa [#allocation3], 0
    %s9 = scalar_lea.sflag [#allocation3], 1
    %10 = vsyncpa %s9, 0
    loop: start=0, step=1, limit=4
    $region2: #{tpu_custom_call.1} parent=1 // loop_pre_header
      _
    $region3: #{tpu_custom_call.1} parent=1 // loop_header
      %s12 = sphi 0, %s16
      %p13 = scmp.ge.s32.totalorder %s12, 4
      %s19 = sphi 0, %s31
      %s20 = sphi 0, %s27
      %s21 = sphi 0, %s19
      %s22 = sphi 0, %s20
      %s23 = sphi 0, %s21
      %s24 = sphi 0, %s22
      %s34 = sphi 0, %s36
      %s37 = sphi 0, %s34
      %s38 = sphi 0, %s37
      %s54 = sphi 0, %s38
      %s60 = sphi 0, %s62
      %s63 = sphi 0, %s60
      %s64 = sphi 0, %s63
      %s80 = sphi 0, %s64
      %s86 = sphi 0, %s88
      %s89 = sphi 0, %s86
      %s90 = sphi 0, %s89
      %s106 = sphi 0, %s90
      %s114 = sphi 0, %s116
      %s117 = sphi 0, %s114
      %s118 = sphi 0, %s117
      %s134 = sphi 0, %s118
    $region4: #{tpu_custom_call.1} parent=1 // loop_header_branch
      %15 = sbr.rel (%p13) target = $region8
    $region5: #{tpu_custom_call.1} parent=1 // loop_body
      %s17 = ssub.s32 %s12, 1
      %s18 = ssub.s32 %s12, 2
      %s25 = sadd.s32 1, %s20
      %p26 = scmp.ge.s32.totalorder %s25, 1
      %s27 = scalar_select %p26, 0, %s25
      %s28 = sadd.s32 1, %s19
      %s29 = scalar_select %p26, %s28, %s19
      %p30 = scmp.ge.s32.totalorder %s29, 2
      %s31 = scalar_select %p30, 0, %s29
      %s32 = ssub.s32 %s19, %s31
      %p33 = scmp.eq.s32.totalorder %s32, 0
      %s35 = sadd.s32 %s34, 1
      %s36 = scalar_select %p33, %s34, %s35
      %p39 = pneg %p33
      %p40 = scmp.eq.s32.totalorder %s12, 1
      %p41 = por %p39, %p40
      %p42 = scmp.ne.s32.totalorder %s34, %s37
      %p43 = scmp.eq.s32.totalorder %s12, 0
      %p44 = por %p42, %p43
      %p45 = scmp.ne.s32.totalorder %s34, %s37
      %p46 = scmp.eq.s32.totalorder %s17, 1
      %p47 = por %p45, %p46
      %p48 = scmp.ne.s32.totalorder %s37, %s38
      %p49 = scmp.eq.s32.totalorder %s17, 0
      %p50 = por %p48, %p49
      %p51 = scmp.ne.s32.totalorder %s37, %s38
      %p52 = scmp.eq.s32.totalorder %s18, 1
      %p53 = por %p51, %p52
      %p55 = scmp.ne.s32.totalorder %s38, %s54
      %p56 = scmp.eq.s32.totalorder %s18, 0
      %p57 = por %p55, %p56
      %s58 = ssub.s32 %s20, %s27
      %p59 = scmp.eq.s32.totalorder %s58, 0
      %s61 = sadd.s32 %s60, 1
      %s62 = scalar_select %p59, %s60, %s61
      %p65 = pneg %p59
      %p66 = scmp.eq.s32.totalorder %s12, 1
      %p67 = por %p65, %p66
      %p68 = scmp.ne.s32.totalorder %s60, %s63
      %p69 = scmp.eq.s32.totalorder %s12, 0
      %p70 = por %p68, %p69
      %p71 = scmp.ne.s32.totalorder %s60, %s63
      %p72 = scmp.eq.s32.totalorder %s17, 1
      %p73 = por %p71, %p72
      %p74 = scmp.ne.s32.totalorder %s63, %s64
      %p75 = scmp.eq.s32.totalorder %s17, 0
      %p76 = por %p74, %p75
      %p77 = scmp.ne.s32.totalorder %s63, %s64
      %p78 = scmp.eq.s32.totalorder %s18, 1
      %p79 = por %p77, %p78
      %p81 = scmp.ne.s32.totalorder %s64, %s80
      %p82 = scmp.eq.s32.totalorder %s18, 0
      %p83 = por %p81, %p82
      %s84 = ssub.s32 %s20, %s27
      %p85 = scmp.eq.s32.totalorder %s84, 0
      %s87 = sadd.s32 %s86, 1
      %s88 = scalar_select %p85, %s86, %s87
      %p91 = pneg %p85
      %p92 = scmp.eq.s32.totalorder %s12, 1
      %p93 = por %p91, %p92
      %p94 = scmp.ne.s32.totalorder %s86, %s89
      %p95 = scmp.eq.s32.totalorder %s12, 0
      %p96 = por %p94, %p95
      %p97 = scmp.ne.s32.totalorder %s86, %s89
      %p98 = scmp.eq.s32.totalorder %s17, 1
      %p99 = por %p97, %p98
      %p100 = scmp.ne.s32.totalorder %s89, %s90
      %p101 = scmp.eq.s32.totalorder %s17, 0
      %p102 = por %p100, %p101
      %p103 = scmp.ne.s32.totalorder %s89, %s90
      %p104 = scmp.eq.s32.totalorder %s18, 1
      %p105 = por %p103, %p104
      %p107 = scmp.ne.s32.totalorder %s90, %s106
      %p108 = scmp.eq.s32.totalorder %s18, 0
      %p109 = por %p107, %p108
      %s110 = ssub.s32 %s19, %s31
      %s111 = ssub.s32 %s20, %s27
      %s112 = sor.u32 %s110, %s111
      %p113 = scmp.eq.s32.totalorder %s112, 0
      %s115 = sadd.s32 %s114, 1
      %s116 = scalar_select %p113, %s114, %s115
      %p119 = pneg %p113
      %p120 = scmp.eq.s32.totalorder %s12, 1
      %p121 = por %p119, %p120
      %p122 = scmp.ne.s32.totalorder %s114, %s117
      %p123 = scmp.eq.s32.totalorder %s12, 0
      %p124 = por %p122, %p123
      %p125 = scmp.ne.s32.totalorder %s114, %s117
      %p126 = scmp.eq.s32.totalorder %s17, 1
      %p127 = por %p125, %p126
      %p128 = scmp.ne.s32.totalorder %s117, %s118
      %p129 = scmp.eq.s32.totalorder %s17, 0
      %p130 = por %p128, %p129
      %p131 = scmp.ne.s32.totalorder %s117, %s118
      %p132 = scmp.eq.s32.totalorder %s18, 1
      %p133 = por %p131, %p132
      %p135 = scmp.ne.s32.totalorder %s118, %s134
      %p136 = scmp.eq.s32.totalorder %s18, 0
      %p137 = por %p135, %p136
      %p138 = scmp.le.s32.totalorder 1, %s12
      %p139 = scmp.lt.s32.totalorder %s12, 3
      %p140 = pnand %p138, %p139
      %p141 = pneg %p140
      // Predicated region
      $region9: #{tpu_custom_call.1} parent=5 // pred_check
        _
      $region10: #{tpu_custom_call.1} parent=5 // pred_check_branch
        %143 = sbr.rel (%p140) target = $region12
      $region11: #{tpu_custom_call.1} parent=5 // pred_region
        %s144 = ssub.s32 %s12, 1
        // Predicated region
        $region13: #{tpu_custom_call.1} parent=11 // pred_check
          %p145 = pneg %p76
        $region14: #{tpu_custom_call.1} parent=11 // pred_check_branch
          %147 = sbr.rel (%p145) target = $region16
        $region15: #{tpu_custom_call.1} parent=11 // pred_region
          %s148 = smul.u32 2, %s22
          %p149 = scmp.lt.s32.totalorder %s148, 1
          %s150 = scalar_select %p149, %s148, 1
          %s151 = smul.addr %s150, 4
          %s152 = scalar_lea.vmem %s1, %s151
          %s153 = smul.u32 2, %s22
        $region16: #{tpu_custom_call.1} parent=11 // pred_fallthru
          _
        // Predicated region
        $region17: #{tpu_custom_call.1} parent=11 // pred_check
          %p154 = pneg %p102
        $region18: #{tpu_custom_call.1} parent=11 // pred_check_branch
          %156 = sbr.rel (%p154) target = $region20
        $region19: #{tpu_custom_call.1} parent=11 // pred_region
          %s157 = smul.u32 2, %s22
          %p158 = scmp.lt.s32.totalorder %s157, 1
          %s159 = scalar_select %p158, %s157, 1
          %s160 = scalar_lea.vmem %s2, %s159
          %s161 = smul.u32 2, %s22
        $region20: #{tpu_custom_call.1} parent=11 // pred_fallthru
          _
      $region12: #{tpu_custom_call.1} parent=5 // pred_fallthru
        _
      %p162 = scmp.lt.s32.totalorder %s12, 2
      // Predicated region
      $region21: #{tpu_custom_call.1} parent=5 // pred_check
        %p163 = pneg %p162
      $region22: #{tpu_custom_call.1} parent=5 // pred_check_branch
        %165 = sbr.rel (%p163) target = $region24
      $region23: #{tpu_custom_call.1} parent=5 // pred_region
        // Predicated region
        $region25: #{tpu_custom_call.1} parent=23 // pred_check
          %p166 = pneg %p44
        $region26: #{tpu_custom_call.1} parent=23 // pred_check_branch
          %168 = sbr.rel (%p166) target = $region28
        $region27: #{tpu_custom_call.1} parent=23 // pred_region
          %s169 = smul.u32 64, %s19
          %p170 = scmp.lt.s32.totalorder %s169, 127
          %s171 = scalar_select %p170, %s169, 127
          %s172 = smul.addr %s171, 2
          %s173 = smul.addr %s172, 8
          %s174 = scalar_lea.vmem %s0, %s173
          %s175 = smul.u32 64, %s19
        $region28: #{tpu_custom_call.1} parent=23 // pred_fallthru
          _
      $region24: #{tpu_custom_call.1} parent=5 // pred_fallthru
        _
      %p176 = scmp.le.s32.totalorder 1, %s12
      %p177 = scmp.lt.s32.totalorder %s12, 3
      %p178 = pnand %p176, %p177
      %p179 = pneg %p178
      // Predicated region
      $region29: #{tpu_custom_call.1} parent=5 // pred_check
        _
      $region30: #{tpu_custom_call.1} parent=5 // pred_check_branch
        %181 = sbr.rel (%p178) target = $region32
      $region31: #{tpu_custom_call.1} parent=5 // pred_region
        %s182 = ssub.s32 %s12, 1
        %s183 = smul.u32 64, %s21
        %p184 = scmp.lt.s32.totalorder %s183, 127
        %s185 = scalar_select %p184, %s183, 127
        %s186 = smul.addr %s185, 2
        %s187 = smul.addr %s186, 8
        %s188 = scalar_lea.vmem %s0, %s187
        %p189 = pneg %p50
        %p190 = pneg %p47
        %s191 = smul.u32 2, %s22
        %p192 = scmp.lt.s32.totalorder %s191, 1
        %s193 = scalar_select %p192, %s191, 1
        %s194 = smul.addr %s193, 4
        %s195 = scalar_lea.vmem %s1, %s194
        %p196 = pneg %p76
        %p197 = pneg %p73
        %s198 = smul.u32 2, %s22
        %p199 = scmp.lt.s32.totalorder %s198, 1
        %s200 = scalar_select %p199, %s198, 1
        %s201 = scalar_lea.vmem %s2, %s200
        %p202 = pneg %p102
        %p203 = pneg %p99
        %p204 = pneg %p130
        %p205 = pneg %p127
        %s206 = sand.u32 %s117, 1
        %s207 = scalar_lea.sflag [#allocation3], %s206
        %s208 = sand.u32 %s117, 1
        %s209 = smul.addr %s208, 1024
        %s210 = scalar_lea.vmem [#allocation2], %s209
        %s211 = smul.u32 64, %s21
        %p212 = scmp.lt.s32.totalorder %s211, 127
        %s213 = scalar_select %p212, %s211, 127
        %s214 = smul.addr %s213, 2
        %s215 = smul.addr %s214, 8
        %s216 = scalar_lea.vmem %s0, %s215
        %s217 = smul.u32 64, %s21
        %s218 = smul.u32 2, %s22
        %p219 = scmp.lt.s32.totalorder %s218, 1
        %s220 = scalar_select %p219, %s218, 1
        %s221 = smul.addr %s220, 4
        %s222 = scalar_lea.vmem %s1, %s221
        %s223 = smul.u32 2, %s22
        %s224 = smul.u32 2, %s22
        %p225 = scmp.lt.s32.totalorder %s224, 1
        %s226 = scalar_select %p225, %s224, 1
        %s227 = scalar_lea.vmem %s2, %s226
        %s228 = smul.u32 2, %s22
        %s229 = smul.u32 64, %s21
        %s230 = smul.u32 2, %s22
        %v232 = vld [vmem:[%s216] sm:$0xff]
        %v233 = vld [vmem:[%s216 + $0x8] sm:$0xff]
        %v234 = vld [vmem:[%s216 + $0x10] sm:$0xff]
        %v235 = vld [vmem:[%s216 + $0x18] sm:$0xff]
        %v236 = vld [vmem:[%s216 + $0x20] sm:$0xff]
        %v237 = vld [vmem:[%s216 + $0x28] sm:$0xff]
        %v238 = vld [vmem:[%s216 + $0x30] sm:$0xff]
        %v239 = vld [vmem:[%s216 + $0x38] sm:$0xff]
        %v240 = vld [vmem:[%s216 + $0x40] sm:$0xff]
        %v241 = vld [vmem:[%s216 + $0x48] sm:$0xff]
        %v242 = vld [vmem:[%s216 + $0x50] sm:$0xff]
        %v243 = vld [vmem:[%s216 + $0x58] sm:$0xff]
        %v244 = vld [vmem:[%s216 + $0x60] sm:$0xff]
        %v245 = vld [vmem:[%s216 + $0x68] sm:$0xff]
        %v246 = vld [vmem:[%s216 + $0x70] sm:$0xff]
        %v247 = vld [vmem:[%s216 + $0x78] sm:$0xff]
        %v248 = vld [vmem:[%s216 + $0x80] sm:$0xff]
        %v249 = vld [vmem:[%s216 + $0x88] sm:$0xff]
        %v250 = vld [vmem:[%s216 + $0x90] sm:$0xff]
        %v251 = vld [vmem:[%s216 + $0x98] sm:$0xff]
        %v252 = vld [vmem:[%s216 + $0xa0] sm:$0xff]
        %v253 = vld [vmem:[%s216 + $0xa8] sm:$0xff]
        %v254 = vld [vmem:[%s216 + $0xb0] sm:$0xff]
        %v255 = vld [vmem:[%s216 + $0xb8] sm:$0xff]
        %v256 = vld [vmem:[%s216 + $0xc0] sm:$0xff]
        %v257 = vld [vmem:[%s216 + $0xc8] sm:$0xff]
        %v258 = vld [vmem:[%s216 + $0xd0] sm:$0xff]
        %v259 = vld [vmem:[%s216 + $0xd8] sm:$0xff]
        %v260 = vld [vmem:[%s216 + $0xe0] sm:$0xff]
        %v261 = vld [vmem:[%s216 + $0xe8] sm:$0xff]
        %v262 = vld [vmem:[%s216 + $0xf0] sm:$0xff]
        %v263 = vld [vmem:[%s216 + $0xf8] sm:$0xff]
        %v264 = vld [vmem:[%s216 + $0x100] sm:$0xff]
        %v265 = vld [vmem:[%s216 + $0x108] sm:$0xff]
        %v266 = vld [vmem:[%s216 + $0x110] sm:$0xff]
        %v267 = vld [vmem:[%s216 + $0x118] sm:$0xff]
        %v268 = vld [vmem:[%s216 + $0x120] sm:$0xff]
        %v269 = vld [vmem:[%s216 + $0x128] sm:$0xff]
        %v270 = vld [vmem:[%s216 + $0x130] sm:$0xff]
        %v271 = vld [vmem:[%s216 + $0x138] sm:$0xff]
        %v272 = vld [vmem:[%s216 + $0x140] sm:$0xff]
        %v273 = vld [vmem:[%s216 + $0x148] sm:$0xff]
        %v274 = vld [vmem:[%s216 + $0x150] sm:$0xff]
        %v275 = vld [vmem:[%s216 + $0x158] sm:$0xff]
        %v276 = vld [vmem:[%s216 + $0x160] sm:$0xff]
        %v277 = vld [vmem:[%s216 + $0x168] sm:$0xff]
        %v278 = vld [vmem:[%s216 + $0x170] sm:$0xff]
        %v279 = vld [vmem:[%s216 + $0x178] sm:$0xff]
        %v280 = vld [vmem:[%s216 + $0x180] sm:$0xff]
        %v281 = vld [vmem:[%s216 + $0x188] sm:$0xff]
        %v282 = vld [vmem:[%s216 + $0x190] sm:$0xff]
        %v283 = vld [vmem:[%s216 + $0x198] sm:$0xff]
        %v284 = vld [vmem:[%s216 + $0x1a0] sm:$0xff]
        %v285 = vld [vmem:[%s216 + $0x1a8] sm:$0xff]
        %v286 = vld [vmem:[%s216 + $0x1b0] sm:$0xff]
        %v287 = vld [vmem:[%s216 + $0x1b8] sm:$0xff]
        %v288 = vld [vmem:[%s216 + $0x1c0] sm:$0xff]
        %v289 = vld [vmem:[%s216 + $0x1c8] sm:$0xff]
        %v290 = vld [vmem:[%s216 + $0x1d0] sm:$0xff]
        %v291 = vld [vmem:[%s216 + $0x1d8] sm:$0xff]
        %v292 = vld [vmem:[%s216 + $0x1e0] sm:$0xff]
        %v293 = vld [vmem:[%s216 + $0x1e8] sm:$0xff]
        %v294 = vld [vmem:[%s216 + $0x1f0] sm:$0xff]
        %v295 = vld [vmem:[%s216 + $0x1f8] sm:$0xff]
        %v296 = vld [vmem:[%s216 + $0x200] sm:$0xff]
        %v297 = vld [vmem:[%s216 + $0x208] sm:$0xff]
        %v298 = vld [vmem:[%s216 + $0x210] sm:$0xff]
        %v299 = vld [vmem:[%s216 + $0x218] sm:$0xff]
        %v300 = vld [vmem:[%s216 + $0x220] sm:$0xff]
        %v301 = vld [vmem:[%s216 + $0x228] sm:$0xff]
        %v302 = vld [vmem:[%s216 + $0x230] sm:$0xff]
        %v303 = vld [vmem:[%s216 + $0x238] sm:$0xff]
        %v304 = vld [vmem:[%s216 + $0x240] sm:$0xff]
        %v305 = vld [vmem:[%s216 + $0x248] sm:$0xff]
        %v306 = vld [vmem:[%s216 + $0x250] sm:$0xff]
        %v307 = vld [vmem:[%s216 + $0x258] sm:$0xff]
        %v308 = vld [vmem:[%s216 + $0x260] sm:$0xff]
        %v309 = vld [vmem:[%s216 + $0x268] sm:$0xff]
        %v310 = vld [vmem:[%s216 + $0x270] sm:$0xff]
        %v311 = vld [vmem:[%s216 + $0x278] sm:$0xff]
        %v312 = vld [vmem:[%s216 + $0x280] sm:$0xff]
        %v313 = vld [vmem:[%s216 + $0x288] sm:$0xff]
        %v314 = vld [vmem:[%s216 + $0x290] sm:$0xff]
        %v315 = vld [vmem:[%s216 + $0x298] sm:$0xff]
        %v316 = vld [vmem:[%s216 + $0x2a0] sm:$0xff]
        %v317 = vld [vmem:[%s216 + $0x2a8] sm:$0xff]
        %v318 = vld [vmem:[%s216 + $0x2b0] sm:$0xff]
        %v319 = vld [vmem:[%s216 + $0x2b8] sm:$0xff]
        %v320 = vld [vmem:[%s216 + $0x2c0] sm:$0xff]
        %v321 = vld [vmem:[%s216 + $0x2c8] sm:$0xff]
        %v322 = vld [vmem:[%s216 + $0x2d0] sm:$0xff]
        %v323 = vld [vmem:[%s216 + $0x2d8] sm:$0xff]
        %v324 = vld [vmem:[%s216 + $0x2e0] sm:$0xff]
        %v325 = vld [vmem:[%s216 + $0x2e8] sm:$0xff]
        %v326 = vld [vmem:[%s216 + $0x2f0] sm:$0xff]
        %v327 = vld [vmem:[%s216 + $0x2f8] sm:$0xff]
        %v328 = vld [vmem:[%s216 + $0x300] sm:$0xff]
        %v329 = vld [vmem:[%s216 + $0x308] sm:$0xff]
        %v330 = vld [vmem:[%s216 + $0x310] sm:$0xff]
        %v331 = vld [vmem:[%s216 + $0x318] sm:$0xff]
        %v332 = vld [vmem:[%s216 + $0x320] sm:$0xff]
        %v333 = vld [vmem:[%s216 + $0x328] sm:$0xff]
        %v334 = vld [vmem:[%s216 + $0x330] sm:$0xff]
        %v335 = vld [vmem:[%s216 + $0x338] sm:$0xff]
        %v336 = vld [vmem:[%s216 + $0x340] sm:$0xff]
        %v337 = vld [vmem:[%s216 + $0x348] sm:$0xff]
        %v338 = vld [vmem:[%s216 + $0x350] sm:$0xff]
        %v339 = vld [vmem:[%s216 + $0x358] sm:$0xff]
        %v340 = vld [vmem:[%s216 + $0x360] sm:$0xff]
        %v341 = vld [vmem:[%s216 + $0x368] sm:$0xff]
        %v342 = vld [vmem:[%s216 + $0x370] sm:$0xff]
        %v343 = vld [vmem:[%s216 + $0x378] sm:$0xff]
        %v344 = vld [vmem:[%s216 + $0x380] sm:$0xff]
        %v345 = vld [vmem:[%s216 + $0x388] sm:$0xff]
        %v346 = vld [vmem:[%s216 + $0x390] sm:$0xff]
        %v347 = vld [vmem:[%s216 + $0x398] sm:$0xff]
        %v348 = vld [vmem:[%s216 + $0x3a0] sm:$0xff]
        %v349 = vld [vmem:[%s216 + $0x3a8] sm:$0xff]
        %v350 = vld [vmem:[%s216 + $0x3b0] sm:$0xff]
        %v351 = vld [vmem:[%s216 + $0x3b8] sm:$0xff]
        %v352 = vld [vmem:[%s216 + $0x3c0] sm:$0xff]
        %v353 = vld [vmem:[%s216 + $0x3c8] sm:$0xff]
        %v354 = vld [vmem:[%s216 + $0x3d0] sm:$0xff]
        %v355 = vld [vmem:[%s216 + $0x3d8] sm:$0xff]
        %v356 = vld [vmem:[%s216 + $0x3e0] sm:$0xff]
        %v357 = vld [vmem:[%s216 + $0x3e8] sm:$0xff]
        %v358 = vld [vmem:[%s216 + $0x3f0] sm:$0xff]
        %v359 = vld [vmem:[%s216 + $0x3f8] sm:$0xff]
        %v360 = vpack.c.bf16 %v234, %v232
        %v361 = vpack.c.bf16 %v235, %v233
        %v362 = vpack.c.bf16 %v238, %v236
        %v363 = vpack.c.bf16 %v239, %v237
        %v364 = vpack.c.bf16 %v242, %v240
        %v365 = vpack.c.bf16 %v243, %v241
        %v366 = vpack.c.bf16 %v246, %v244
        %v367 = vpack.c.bf16 %v247, %v245
        %v368 = vpack.c.bf16 %v250, %v248
        %v369 = vpack.c.bf16 %v251, %v249
        %v370 = vpack.c.bf16 %v254, %v252
        %v371 = vpack.c.bf16 %v255, %v253
        %v372 = vpack.c.bf16 %v258, %v256
        %v373 = vpack.c.bf16 %v259, %v257
        %v374 = vpack.c.bf16 %v262, %v260
        %v375 = vpack.c.bf16 %v263, %v261
        %v376 = vpack.c.bf16 %v266, %v264
        %v377 = vpack.c.bf16 %v267, %v265
        %v378 = vpack.c.bf16 %v270, %v268
        %v379 = vpack.c.bf16 %v271, %v269
        %v380 = vpack.c.bf16 %v274, %v272
        %v381 = vpack.c.bf16 %v275, %v273
        %v382 = vpack.c.bf16 %v278, %v276
        %v383 = vpack.c.bf16 %v279, %v277
        %v384 = vpack.c.bf16 %v282, %v280
        %v385 = vpack.c.bf16 %v283, %v281
        %v386 = vpack.c.bf16 %v286, %v284
        %v387 = vpack.c.bf16 %v287, %v285
        %v388 = vpack.c.bf16 %v290, %v288
        %v389 = vpack.c.bf16 %v291, %v289
        %v390 = vpack.c.bf16 %v294, %v292
        %v391 = vpack.c.bf16 %v295, %v293
        %v392 = vpack.c.bf16 %v298, %v296
        %v393 = vpack.c.bf16 %v299, %v297
        %v394 = vpack.c.bf16 %v302, %v300
        %v395 = vpack.c.bf16 %v303, %v301
        %v396 = vpack.c.bf16 %v306, %v304
        %v397 = vpack.c.bf16 %v307, %v305
        %v398 = vpack.c.bf16 %v310, %v308
        %v399 = vpack.c.bf16 %v311, %v309
        %v400 = vpack.c.bf16 %v314, %v312
        %v401 = vpack.c.bf16 %v315, %v313
        %v402 = vpack.c.bf16 %v318, %v316
        %v403 = vpack.c.bf16 %v319, %v317
        %v404 = vpack.c.bf16 %v322, %v320
        %v405 = vpack.c.bf16 %v323, %v321
        %v406 = vpack.c.bf16 %v326, %v324
        %v407 = vpack.c.bf16 %v327, %v325
        %v408 = vpack.c.bf16 %v330, %v328
        %v409 = vpack.c.bf16 %v331, %v329
        %v410 = vpack.c.bf16 %v334, %v332
        %v411 = vpack.c.bf16 %v335, %v333
        %v412 = vpack.c.bf16 %v338, %v336
        %v413 = vpack.c.bf16 %v339, %v337
        %v414 = vpack.c.bf16 %v342, %v340
        %v415 = vpack.c.bf16 %v343, %v341
        %v416 = vpack.c.bf16 %v346, %v344
        %v417 = vpack.c.bf16 %v347, %v345
        %v418 = vpack.c.bf16 %v350, %v348
        %v419 = vpack.c.bf16 %v351, %v349
        %v420 = vpack.c.bf16 %v354, %v352
        %v421 = vpack.c.bf16 %v355, %v353
        %v422 = vpack.c.bf16 %v358, %v356
        %v423 = vpack.c.bf16 %v359, %v357
        %v424 = vld [vmem:[%s222] sm:$0xff]
        %v425 = vld [vmem:[%s222 + $0x8] sm:$0xff]
        %v426 = vld [vmem:[%s222 + $0x10] sm:$0xff]
        %v427 = vld [vmem:[%s222 + $0x18] sm:$0xff]
        %v428 = vld [vmem:[%s222 + $0x20] sm:$0xff]
        %v429 = vld [vmem:[%s222 + $0x28] sm:$0xff]
        %v430 = vld [vmem:[%s222 + $0x30] sm:$0xff]
        %v431 = vld [vmem:[%s222 + $0x38] sm:$0xff]
        %v432 = vld [vmem:[%s222 + $0x40] sm:$0xff]
        %v433 = vld [vmem:[%s222 + $0x48] sm:$0xff]
        %v434 = vld [vmem:[%s222 + $0x50] sm:$0xff]
        %v435 = vld [vmem:[%s222 + $0x58] sm:$0xff]
        %v436 = vld [vmem:[%s222 + $0x60] sm:$0xff]
        %v437 = vld [vmem:[%s222 + $0x68] sm:$0xff]
        %v438 = vld [vmem:[%s222 + $0x70] sm:$0xff]
        %v439 = vld [vmem:[%s222 + $0x78] sm:$0xff]
        %v440 = vld [vmem:[%s222 + $0x80] sm:$0xff]
        %v441 = vld [vmem:[%s222 + $0x88] sm:$0xff]
        %v442 = vld [vmem:[%s222 + $0x90] sm:$0xff]
        %v443 = vld [vmem:[%s222 + $0x98] sm:$0xff]
        %v444 = vld [vmem:[%s222 + $0xa0] sm:$0xff]
        %v445 = vld [vmem:[%s222 + $0xa8] sm:$0xff]
        %v446 = vld [vmem:[%s222 + $0xb0] sm:$0xff]
        %v447 = vld [vmem:[%s222 + $0xb8] sm:$0xff]
        %v448 = vld [vmem:[%s227] sm:$0x3]
        %v450 = vperm.slane %v448, 0
        %v451 = vperm.slane %v448, 1
        %v478 = vunpack.c.l.b16 %v424
        %v479 = vunpack.c.h.b16 %v424
        %v480 = vunpack.c.l.b16 %v425
        %v481 = vunpack.c.h.b16 %v425
        %v482 = vunpack.c.l.b16 %v426
        %v483 = vunpack.c.h.b16 %v426
        %v484 = vunpack.c.l.b16 %v427
        %v485 = vunpack.c.h.b16 %v427
        %v486 = vunpack.c.l.b16 %v428
        %v487 = vunpack.c.h.b16 %v428
        %v488 = vunpack.c.l.b16 %v429
        %v489 = vunpack.c.h.b16 %v429
        %v490 = vunpack.c.l.b16 %v430
        %v491 = vunpack.c.h.b16 %v430
        %v492 = vunpack.c.l.b16 %v431
        %v493 = vunpack.c.h.b16 %v431
        %v494 = vunpack.c.l.b16 %v432
        %v495 = vunpack.c.h.b16 %v432
        %v496 = vunpack.c.l.b16 %v433
        %v497 = vunpack.c.h.b16 %v433
        %v498 = vunpack.c.l.b16 %v434
        %v499 = vunpack.c.h.b16 %v434
        %v500 = vunpack.c.l.b16 %v435
        %v501 = vunpack.c.h.b16 %v435
        %v502 = vunpack.c.l.b16 %v436
        %v503 = vunpack.c.h.b16 %v436
        %v504 = vunpack.c.l.b16 %v437
        %v505 = vunpack.c.h.b16 %v437
        %v506 = vunpack.c.l.b16 %v438
        %v507 = vunpack.c.h.b16 %v438
        %v508 = vunpack.c.l.b16 %v439
        %v509 = vunpack.c.h.b16 %v439
        %v510 = vunpack.c.l.b16 %v440
        %v511 = vunpack.c.h.b16 %v440
        %v512 = vunpack.c.l.b16 %v441
        %v513 = vunpack.c.h.b16 %v441
        %v514 = vunpack.c.l.b16 %v442
        %v515 = vunpack.c.h.b16 %v442
        %v516 = vunpack.c.l.b16 %v443
        %v517 = vunpack.c.h.b16 %v443
        %v518 = vunpack.c.l.b16 %v444
        %v519 = vunpack.c.h.b16 %v444
        %v520 = vunpack.c.l.b16 %v445
        %v521 = vunpack.c.h.b16 %v445
        %v522 = vunpack.c.l.b16 %v446
        %v523 = vunpack.c.h.b16 %v446
        %v524 = vunpack.c.l.b16 %v447
        %v525 = vunpack.c.h.b16 %v447
        %v526 = vpack.c.b16 %v480, %v478
        %v527 = vpack.c.b16 %v481, %v479
        %v528 = vpack.c.b16 %v484, %v482
        %v529 = vpack.c.b16 %v485, %v483
        %v530 = vpack.c.b16 %v488, %v486
        %v531 = vpack.c.b16 %v489, %v487
        %v532 = vpack.c.b16 %v492, %v490
        %v533 = vpack.c.b16 %v493, %v491
        %v534 = vpack.c.b16 %v496, %v494
        %v535 = vpack.c.b16 %v497, %v495
        %v536 = vpack.c.b16 %v500, %v498
        %v537 = vpack.c.b16 %v501, %v499
        %v538 = vpack.c.b16 %v504, %v502
        %v539 = vpack.c.b16 %v505, %v503
        %v540 = vpack.c.b16 %v508, %v506
        %v541 = vpack.c.b16 %v509, %v507
        %v542 = vpack.c.b16 %v512, %v510
        %v543 = vpack.c.b16 %v513, %v511
        %v544 = vpack.c.b16 %v516, %v514
        %v545 = vpack.c.b16 %v517, %v515
        %v546 = vpack.c.b16 %v520, %v518
        %v547 = vpack.c.b16 %v521, %v519
        %v548 = vpack.c.b16 %v524, %v522
        %v549 = vpack.c.b16 %v525, %v523
        %vm574 = vcmask 523264
        %v576 = vsel %vm574, %v361, 0
        %v579 = vsel %vm574, %v363, 0
        %v582 = vsel %vm574, %v365, 0
        %v585 = vsel %vm574, %v367, 0
        %v588 = vsel %vm574, %v369, 0
        %v591 = vsel %vm574, %v371, 0
        %v594 = vsel %vm574, %v373, 0
        %v597 = vsel %vm574, %v375, 0
        %v600 = vsel %vm574, %v377, 0
        %v603 = vsel %vm574, %v379, 0
        %v606 = vsel %vm574, %v381, 0
        %v609 = vsel %vm574, %v383, 0
        %v612 = vsel %vm574, %v385, 0
        %v615 = vsel %vm574, %v387, 0
        %v618 = vsel %vm574, %v389, 0
        %v621 = vsel %vm574, %v391, 0
        %v624 = vsel %vm574, %v393, 0
        %v627 = vsel %vm574, %v395, 0
        %v630 = vsel %vm574, %v397, 0
        %v633 = vsel %vm574, %v399, 0
        %v636 = vsel %vm574, %v401, 0
        %v639 = vsel %vm574, %v403, 0
        %v642 = vsel %vm574, %v405, 0
        %v645 = vsel %vm574, %v407, 0
        %v648 = vsel %vm574, %v409, 0
        %v651 = vsel %vm574, %v411, 0
        %v654 = vsel %vm574, %v413, 0
        %v657 = vsel %vm574, %v415, 0
        %v660 = vsel %vm574, %v417, 0
        %v663 = vsel %vm574, %v419, 0
        %v666 = vsel %vm574, %v421, 0
        %v669 = vsel %vm574, %v423, 0
        %671 = vmatpush.bf16.msra.mxu0 %v540
        %672 = vmatpush.bf16.msra.mxu0 %v538
        %673 = vmatpush.bf16.msra.mxu0 %v536
        %674 = vmatpush.bf16.msra.mxu0 %v534
        %675 = vmatpush.bf16.msra.mxu0 %v532
        %676 = vmatpush.bf16.msra.mxu0 %v530
        %677 = vmatpush.bf16.msra.mxu0 %v528
        %678 = vmatpush.bf16.msra.mxu0 %v526
        %679 = vmatmul.bf16.gmra.mxu0 %v360
        %v680 = vpop.f32.mrf.mxu0
        %v681 = vadd.f32 %v450, %v680
        %v682 = vpop.f32.mrf.mxu0
        %v683 = vadd.f32 %v450, %v682
        %684 = vmatmul.bf16.gmra.mxu0 %v362
        %v685 = vpop.f32.mrf.mxu0
        %v686 = vadd.f32 %v450, %v685
        %v687 = vpop.f32.mrf.mxu0
        %v688 = vadd.f32 %v450, %v687
        %689 = vmatmul.bf16.gmra.mxu0 %v364
        %v690 = vpop.f32.mrf.mxu0
        %v691 = vadd.f32 %v450, %v690
        %v692 = vpop.f32.mrf.mxu0
        %v693 = vadd.f32 %v450, %v692
        %694 = vmatmul.bf16.gmra.mxu0 %v366
        %v695 = vpop.f32.mrf.mxu0
        %v696 = vadd.f32 %v450, %v695
        %v697 = vpop.f32.mrf.mxu0
        %v698 = vadd.f32 %v450, %v697
        %699 = vmatmul.bf16.gmra.mxu0 %v368
        %v700 = vpop.f32.mrf.mxu0
        %v701 = vadd.f32 %v450, %v700
        %v702 = vpop.f32.mrf.mxu0
        %v703 = vadd.f32 %v450, %v702
        %704 = vmatmul.bf16.gmra.mxu0 %v370
        %v705 = vpop.f32.mrf.mxu0
        %v706 = vadd.f32 %v450, %v705
        %v707 = vpop.f32.mrf.mxu0
        %v708 = vadd.f32 %v450, %v707
        %709 = vmatmul.bf16.gmra.mxu0 %v372
        %v710 = vpop.f32.mrf.mxu0
        %v711 = vadd.f32 %v450, %v710
        %v712 = vpop.f32.mrf.mxu0
        %v713 = vadd.f32 %v450, %v712
        %714 = vmatmul.bf16.gmra.mxu0 %v374
        %v715 = vpop.f32.mrf.mxu0
        %v716 = vadd.f32 %v450, %v715
        %v717 = vpop.f32.mrf.mxu0
        %v718 = vadd.f32 %v450, %v717
        %719 = vmatmul.bf16.gmra.mxu0 %v376
        %v720 = vpop.f32.mrf.mxu0
        %v721 = vadd.f32 %v450, %v720
        %v722 = vpop.f32.mrf.mxu0
        %v723 = vadd.f32 %v450, %v722
        %724 = vmatmul.bf16.gmra.mxu0 %v378
        %v725 = vpop.f32.mrf.mxu0
        %v726 = vadd.f32 %v450, %v725
        %v727 = vpop.f32.mrf.mxu0
        %v728 = vadd.f32 %v450, %v727
        %729 = vmatmul.bf16.gmra.mxu0 %v380
        %v730 = vpop.f32.mrf.mxu0
        %v731 = vadd.f32 %v450, %v730
        %v732 = vpop.f32.mrf.mxu0
        %v733 = vadd.f32 %v450, %v732
        %734 = vmatmul.bf16.gmra.mxu0 %v382
        %v735 = vpop.f32.mrf.mxu0
        %v736 = vadd.f32 %v450, %v735
        %v737 = vpop.f32.mrf.mxu0
        %v738 = vadd.f32 %v450, %v737
        %739 = vmatmul.bf16.gmra.mxu0 %v384
        %v740 = vpop.f32.mrf.mxu0
        %v741 = vadd.f32 %v450, %v740
        %v742 = vpop.f32.mrf.mxu0
        %v743 = vadd.f32 %v450, %v742
        %744 = vmatmul.bf16.gmra.mxu0 %v386
        %v745 = vpop.f32.mrf.mxu0
        %v746 = vadd.f32 %v450, %v745
        %v747 = vpop.f32.mrf.mxu0
        %v748 = vadd.f32 %v450, %v747
        %749 = vmatmul.bf16.gmra.mxu0 %v388
        %v750 = vpop.f32.mrf.mxu0
        %v751 = vadd.f32 %v450, %v750
        %v752 = vpop.f32.mrf.mxu0
        %v753 = vadd.f32 %v450, %v752
        %754 = vmatmul.bf16.gmra.mxu0 %v390
        %v755 = vpop.f32.mrf.mxu0
        %v756 = vadd.f32 %v450, %v755
        %v757 = vpop.f32.mrf.mxu0
        %v758 = vadd.f32 %v450, %v757
        %759 = vmatmul.bf16.gmra.mxu0 %v392
        %v760 = vpop.f32.mrf.mxu0
        %v761 = vadd.f32 %v450, %v760
        %v762 = vpop.f32.mrf.mxu0
        %v763 = vadd.f32 %v450, %v762
        %764 = vmatmul.bf16.gmra.mxu0 %v394
        %v765 = vpop.f32.mrf.mxu0
        %v766 = vadd.f32 %v450, %v765
        %v767 = vpop.f32.mrf.mxu0
        %v768 = vadd.f32 %v450, %v767
        %769 = vmatmul.bf16.gmra.mxu0 %v396
        %v770 = vpop.f32.mrf.mxu0
        %v771 = vadd.f32 %v450, %v770
        %v772 = vpop.f32.mrf.mxu0
        %v773 = vadd.f32 %v450, %v772
        %774 = vmatmul.bf16.gmra.mxu0 %v398
        %v775 = vpop.f32.mrf.mxu0
        %v776 = vadd.f32 %v450, %v775
        %v777 = vpop.f32.mrf.mxu0
        %v778 = vadd.f32 %v450, %v777
        %779 = vmatmul.bf16.gmra.mxu0 %v400
        %v780 = vpop.f32.mrf.mxu0
        %v781 = vadd.f32 %v450, %v780
        %v782 = vpop.f32.mrf.mxu0
        %v783 = vadd.f32 %v450, %v782
        %784 = vmatmul.bf16.gmra.mxu0 %v402
        %v785 = vpop.f32.mrf.mxu0
        %v786 = vadd.f32 %v450, %v785
        %v787 = vpop.f32.mrf.mxu0
        %v788 = vadd.f32 %v450, %v787
        %789 = vmatmul.bf16.gmra.mxu0 %v404
        %v790 = vpop.f32.mrf.mxu0
        %v791 = vadd.f32 %v450, %v790
        %v792 = vpop.f32.mrf.mxu0
        %v793 = vadd.f32 %v450, %v792
        %794 = vmatmul.bf16.gmra.mxu0 %v406
        %v795 = vpop.f32.mrf.mxu0
        %v796 = vadd.f32 %v450, %v795
        %v797 = vpop.f32.mrf.mxu0
        %v798 = vadd.f32 %v450, %v797
        %799 = vmatmul.bf16.gmra.mxu0 %v408
        %v800 = vpop.f32.mrf.mxu0
        %v801 = vadd.f32 %v450, %v800
        %v802 = vpop.f32.mrf.mxu0
        %v803 = vadd.f32 %v450, %v802
        %804 = vmatmul.bf16.gmra.mxu0 %v410
        %v805 = vpop.f32.mrf.mxu0
        %v806 = vadd.f32 %v450, %v805
        %v807 = vpop.f32.mrf.mxu0
        %v808 = vadd.f32 %v450, %v807
        %809 = vmatmul.bf16.gmra.mxu0 %v412
        %v810 = vpop.f32.mrf.mxu0
        %v811 = vadd.f32 %v450, %v810
        %v812 = vpop.f32.mrf.mxu0
        %v813 = vadd.f32 %v450, %v812
        %814 = vmatmul.bf16.gmra.mxu0 %v414
        %v815 = vpop.f32.mrf.mxu0
        %v816 = vadd.f32 %v450, %v815
        %v817 = vpop.f32.mrf.mxu0
        %v818 = vadd.f32 %v450, %v817
        %819 = vmatmul.bf16.gmra.mxu0 %v416
        %v820 = vpop.f32.mrf.mxu0
        %v821 = vadd.f32 %v450, %v820
        %v822 = vpop.f32.mrf.mxu0
        %v823 = vadd.f32 %v450, %v822
        %824 = vmatmul.bf16.gmra.mxu0 %v418
        %v825 = vpop.f32.mrf.mxu0
        %v826 = vadd.f32 %v450, %v825
        %v827 = vpop.f32.mrf.mxu0
        %v828 = vadd.f32 %v450, %v827
        %829 = vmatmul.bf16.gmra.mxu0 %v420
        %v830 = vpop.f32.mrf.mxu0
        %v831 = vadd.f32 %v450, %v830
        %v832 = vpop.f32.mrf.mxu0
        %v833 = vadd.f32 %v450, %v832
        %834 = vmatmul.bf16.gmra.mxu0 %v422
        %v835 = vpop.f32.mrf.mxu0
        %v836 = vadd.f32 %v450, %v835
        %v837 = vpop.f32.mrf.mxu0
        %v838 = vadd.f32 %v450, %v837
        %839 = vdwg.mxu0
        %840 = vmatpush.bf16.msra.mxu0 0
        %841 = vmatpush.bf16.msra.mxu0 0
        %842 = vmatpush.bf16.msra.mxu0 0
        %843 = vmatpush.bf16.msra.mxu0 0
        %844 = vmatpush.bf16.msra.mxu0 %v548
        %845 = vmatpush.bf16.msra.mxu0 %v546
        %846 = vmatpush.bf16.msra.mxu0 %v544
        %847 = vmatpush.bf16.msra.mxu0 %v542
        %848 = vmatmul.bf16.gmra.mxu0 %v576
        %v849 = vpop.f32.mrf.mxu0
        %v850 = vadd.f32 %v681, %v849
        %v851 = vpop.f32.mrf.mxu0
        %v852 = vadd.f32 %v683, %v851
        %853 = vmatmul.bf16.gmra.mxu0 %v579
        %v854 = vpop.f32.mrf.mxu0
        %v855 = vadd.f32 %v686, %v854
        %v856 = vpop.f32.mrf.mxu0
        %v857 = vadd.f32 %v688, %v856
        %858 = vmatmul.bf16.gmra.mxu0 %v582
        %v859 = vpop.f32.mrf.mxu0
        %v860 = vadd.f32 %v691, %v859
        %v861 = vpop.f32.mrf.mxu0
        %v862 = vadd.f32 %v693, %v861
        %863 = vmatmul.bf16.gmra.mxu0 %v585
        %v864 = vpop.f32.mrf.mxu0
        %v865 = vadd.f32 %v696, %v864
        %v866 = vpop.f32.mrf.mxu0
        %v867 = vadd.f32 %v698, %v866
        %868 = vmatmul.bf16.gmra.mxu0 %v588
        %v869 = vpop.f32.mrf.mxu0
        %v870 = vadd.f32 %v701, %v869
        %v871 = vpop.f32.mrf.mxu0
        %v872 = vadd.f32 %v703, %v871
        %873 = vmatmul.bf16.gmra.mxu0 %v591
        %v874 = vpop.f32.mrf.mxu0
        %v875 = vadd.f32 %v706, %v874
        %v876 = vpop.f32.mrf.mxu0
        %v877 = vadd.f32 %v708, %v876
        %878 = vmatmul.bf16.gmra.mxu0 %v594
        %v879 = vpop.f32.mrf.mxu0
        %v880 = vadd.f32 %v711, %v879
        %v881 = vpop.f32.mrf.mxu0
        %v882 = vadd.f32 %v713, %v881
        %883 = vmatmul.bf16.gmra.mxu0 %v597
        %v884 = vpop.f32.mrf.mxu0
        %v885 = vadd.f32 %v716, %v884
        %v886 = vpop.f32.mrf.mxu0
        %v887 = vadd.f32 %v718, %v886
        %888 = vmatmul.bf16.gmra.mxu0 %v600
        %v889 = vpop.f32.mrf.mxu0
        %v890 = vadd.f32 %v721, %v889
        %v891 = vpop.f32.mrf.mxu0
        %v892 = vadd.f32 %v723, %v891
        %893 = vmatmul.bf16.gmra.mxu0 %v603
        %v894 = vpop.f32.mrf.mxu0
        %v895 = vadd.f32 %v726, %v894
        %v896 = vpop.f32.mrf.mxu0
        %v897 = vadd.f32 %v728, %v896
        %898 = vmatmul.bf16.gmra.mxu0 %v606
        %v899 = vpop.f32.mrf.mxu0
        %v900 = vadd.f32 %v731, %v899
        %v901 = vpop.f32.mrf.mxu0
        %v902 = vadd.f32 %v733, %v901
        %903 = vmatmul.bf16.gmra.mxu0 %v609
        %v904 = vpop.f32.mrf.mxu0
        %v905 = vadd.f32 %v736, %v904
        %v906 = vpop.f32.mrf.mxu0
        %v907 = vadd.f32 %v738, %v906
        %908 = vmatmul.bf16.gmra.mxu0 %v612
        %v909 = vpop.f32.mrf.mxu0
        %v910 = vadd.f32 %v741, %v909
        %v911 = vpop.f32.mrf.mxu0
        %v912 = vadd.f32 %v743, %v911
        %913 = vmatmul.bf16.gmra.mxu0 %v615
        %v914 = vpop.f32.mrf.mxu0
        %v915 = vadd.f32 %v746, %v914
        %v916 = vpop.f32.mrf.mxu0
        %v917 = vadd.f32 %v748, %v916
        %918 = vmatmul.bf16.gmra.mxu0 %v618
        %v919 = vpop.f32.mrf.mxu0
        %v920 = vadd.f32 %v751, %v919
        %v921 = vpop.f32.mrf.mxu0
        %v922 = vadd.f32 %v753, %v921
        %923 = vmatmul.bf16.gmra.mxu0 %v621
        %v924 = vpop.f32.mrf.mxu0
        %v925 = vadd.f32 %v756, %v924
        %v926 = vpop.f32.mrf.mxu0
        %v927 = vadd.f32 %v758, %v926
        %928 = vmatmul.bf16.gmra.mxu0 %v624
        %v929 = vpop.f32.mrf.mxu0
        %v930 = vadd.f32 %v761, %v929
        %v931 = vpop.f32.mrf.mxu0
        %v932 = vadd.f32 %v763, %v931
        %933 = vmatmul.bf16.gmra.mxu0 %v627
        %v934 = vpop.f32.mrf.mxu0
        %v935 = vadd.f32 %v766, %v934
        %v936 = vpop.f32.mrf.mxu0
        %v937 = vadd.f32 %v768, %v936
        %938 = vmatmul.bf16.gmra.mxu0 %v630
        %v939 = vpop.f32.mrf.mxu0
        %v940 = vadd.f32 %v771, %v939
        %v941 = vpop.f32.mrf.mxu0
        %v942 = vadd.f32 %v773, %v941
        %943 = vmatmul.bf16.gmra.mxu0 %v633
        %v944 = vpop.f32.mrf.mxu0
        %v945 = vadd.f32 %v776, %v944
        %v946 = vpop.f32.mrf.mxu0
        %v947 = vadd.f32 %v778, %v946
        %948 = vmatmul.bf16.gmra.mxu0 %v636
        %v949 = vpop.f32.mrf.mxu0
        %v950 = vadd.f32 %v781, %v949
        %v951 = vpop.f32.mrf.mxu0
        %v952 = vadd.f32 %v783, %v951
        %953 = vmatmul.bf16.gmra.mxu0 %v639
        %v954 = vpop.f32.mrf.mxu0
        %v955 = vadd.f32 %v786, %v954
        %v956 = vpop.f32.mrf.mxu0
        %v957 = vadd.f32 %v788, %v956
        %958 = vmatmul.bf16.gmra.mxu0 %v642
        %v959 = vpop.f32.mrf.mxu0
        %v960 = vadd.f32 %v791, %v959
        %v961 = vpop.f32.mrf.mxu0
        %v962 = vadd.f32 %v793, %v961
        %963 = vmatmul.bf16.gmra.mxu0 %v645
        %v964 = vpop.f32.mrf.mxu0
        %v965 = vadd.f32 %v796, %v964
        %v966 = vpop.f32.mrf.mxu0
        %v967 = vadd.f32 %v798, %v966
        %968 = vmatmul.bf16.gmra.mxu0 %v648
        %v969 = vpop.f32.mrf.mxu0
        %v970 = vadd.f32 %v801, %v969
        %v971 = vpop.f32.mrf.mxu0
        %v972 = vadd.f32 %v803, %v971
        %973 = vmatmul.bf16.gmra.mxu0 %v651
        %v974 = vpop.f32.mrf.mxu0
        %v975 = vadd.f32 %v806, %v974
        %v976 = vpop.f32.mrf.mxu0
        %v977 = vadd.f32 %v808, %v976
        %978 = vmatmul.bf16.gmra.mxu0 %v654
        %v979 = vpop.f32.mrf.mxu0
        %v980 = vadd.f32 %v811, %v979
        %v981 = vpop.f32.mrf.mxu0
        %v982 = vadd.f32 %v813, %v981
        %983 = vmatmul.bf16.gmra.mxu0 %v657
        %v984 = vpop.f32.mrf.mxu0
        %v985 = vadd.f32 %v816, %v984
        %v986 = vpop.f32.mrf.mxu0
        %v987 = vadd.f32 %v818, %v986
        %988 = vmatmul.bf16.gmra.mxu0 %v660
        %v989 = vpop.f32.mrf.mxu0
        %v990 = vadd.f32 %v821, %v989
        %v991 = vpop.f32.mrf.mxu0
        %v992 = vadd.f32 %v823, %v991
        %993 = vmatmul.bf16.gmra.mxu0 %v663
        %v994 = vpop.f32.mrf.mxu0
        %v995 = vadd.f32 %v826, %v994
        %v996 = vpop.f32.mrf.mxu0
        %v997 = vadd.f32 %v828, %v996
        %998 = vmatmul.bf16.gmra.mxu0 %v666
        %v999 = vpop.f32.mrf.mxu0
        %v1000 = vadd.f32 %v831, %v999
        %v1001 = vpop.f32.mrf.mxu0
        %v1002 = vadd.f32 %v833, %v1001
        %1003 = vmatmul.bf16.gmra.mxu0 %v669
        %v1004 = vpop.f32.mrf.mxu0
        %v1005 = vadd.f32 %v836, %v1004
        %v1006 = vpop.f32.mrf.mxu0
        %v1007 = vadd.f32 %v838, %v1006
        %1008 = vdwg.mxu0
        %1009 = vmatpush.bf16.msra.mxu0 %v541
        %1010 = vmatpush.bf16.msra.mxu0 %v539
        %1011 = vmatpush.bf16.msra.mxu0 %v537
        %1012 = vmatpush.bf16.msra.mxu0 %v535
        %1013 = vmatpush.bf16.msra.mxu0 %v533
        %1014 = vmatpush.bf16.msra.mxu0 %v531
        %1015 = vmatpush.bf16.msra.mxu0 %v529
        %1016 = vmatpush.bf16.msra.mxu0 %v527
        %1017 = vmatmul.bf16.gmra.mxu0 %v360
        %v1018 = vpop.f32.mrf.mxu0
        %v1019 = vadd.f32 %v451, %v1018
        %v1020 = vpop.f32.mrf.mxu0
        %v1021 = vadd.f32 %v451, %v1020
        %1022 = vmatmul.bf16.gmra.mxu0 %v362
        %v1023 = vpop.f32.mrf.mxu0
        %v1024 = vadd.f32 %v451, %v1023
        %v1025 = vpop.f32.mrf.mxu0
        %v1026 = vadd.f32 %v451, %v1025
        %1027 = vmatmul.bf16.gmra.mxu0 %v364
        %v1028 = vpop.f32.mrf.mxu0
        %v1029 = vadd.f32 %v451, %v1028
        %v1030 = vpop.f32.mrf.mxu0
        %v1031 = vadd.f32 %v451, %v1030
        %1032 = vmatmul.bf16.gmra.mxu0 %v366
        %v1033 = vpop.f32.mrf.mxu0
        %v1034 = vadd.f32 %v451, %v1033
        %v1035 = vpop.f32.mrf.mxu0
        %v1036 = vadd.f32 %v451, %v1035
        %1037 = vmatmul.bf16.gmra.mxu0 %v368
        %v1038 = vpop.f32.mrf.mxu0
        %v1039 = vadd.f32 %v451, %v1038
        %v1040 = vpop.f32.mrf.mxu0
        %v1041 = vadd.f32 %v451, %v1040
        %1042 = vmatmul.bf16.gmra.mxu0 %v370
        %v1043 = vpop.f32.mrf.mxu0
        %v1044 = vadd.f32 %v451, %v1043
        %v1045 = vpop.f32.mrf.mxu0
        %v1046 = vadd.f32 %v451, %v1045
        %1047 = vmatmul.bf16.gmra.mxu0 %v372
        %v1048 = vpop.f32.mrf.mxu0
        %v1049 = vadd.f32 %v451, %v1048
        %v1050 = vpop.f32.mrf.mxu0
        %v1051 = vadd.f32 %v451, %v1050
        %1052 = vmatmul.bf16.gmra.mxu0 %v374
        %v1053 = vpop.f32.mrf.mxu0
        %v1054 = vadd.f32 %v451, %v1053
        %v1055 = vpop.f32.mrf.mxu0
        %v1056 = vadd.f32 %v451, %v1055
        %1057 = vmatmul.bf16.gmra.mxu0 %v376
        %v1058 = vpop.f32.mrf.mxu0
        %v1059 = vadd.f32 %v451, %v1058
        %v1060 = vpop.f32.mrf.mxu0
        %v1061 = vadd.f32 %v451, %v1060
        %1062 = vmatmul.bf16.gmra.mxu0 %v378
        %v1063 = vpop.f32.mrf.mxu0
        %v1064 = vadd.f32 %v451, %v1063
        %v1065 = vpop.f32.mrf.mxu0
        %v1066 = vadd.f32 %v451, %v1065
        %1067 = vmatmul.bf16.gmra.mxu0 %v380
        %v1068 = vpop.f32.mrf.mxu0
        %v1069 = vadd.f32 %v451, %v1068
        %v1070 = vpop.f32.mrf.mxu0
        %v1071 = vadd.f32 %v451, %v1070
        %1072 = vmatmul.bf16.gmra.mxu0 %v382
        %v1073 = vpop.f32.mrf.mxu0
        %v1074 = vadd.f32 %v451, %v1073
        %v1075 = vpop.f32.mrf.mxu0
        %v1076 = vadd.f32 %v451, %v1075
        %1077 = vmatmul.bf16.gmra.mxu0 %v384
        %v1078 = vpop.f32.mrf.mxu0
        %v1079 = vadd.f32 %v451, %v1078
        %v1080 = vpop.f32.mrf.mxu0
        %v1081 = vadd.f32 %v451, %v1080
        %1082 = vmatmul.bf16.gmra.mxu0 %v386
        %v1083 = vpop.f32.mrf.mxu0
        %v1084 = vadd.f32 %v451, %v1083
        %v1085 = vpop.f32.mrf.mxu0
        %v1086 = vadd.f32 %v451, %v1085
        %1087 = vmatmul.bf16.gmra.mxu0 %v388
        %v1088 = vpop.f32.mrf.mxu0
        %v1089 = vadd.f32 %v451, %v1088
        %v1090 = vpop.f32.mrf.mxu0
        %v1091 = vadd.f32 %v451, %v1090
        %1092 = vmatmul.bf16.gmra.mxu0 %v390
        %v1093 = vpop.f32.mrf.mxu0
        %v1094 = vadd.f32 %v451, %v1093
        %v1095 = vpop.f32.mrf.mxu0
        %v1096 = vadd.f32 %v451, %v1095
        %1097 = vmatmul.bf16.gmra.mxu0 %v392
        %v1098 = vpop.f32.mrf.mxu0
        %v1099 = vadd.f32 %v451, %v1098
        %v1100 = vpop.f32.mrf.mxu0
        %v1101 = vadd.f32 %v451, %v1100
        %1102 = vmatmul.bf16.gmra.mxu0 %v394
        %v1103 = vpop.f32.mrf.mxu0
        %v1104 = vadd.f32 %v451, %v1103
        %v1105 = vpop.f32.mrf.mxu0
        %v1106 = vadd.f32 %v451, %v1105
        %1107 = vmatmul.bf16.gmra.mxu0 %v396
        %v1108 = vpop.f32.mrf.mxu0
        %v1109 = vadd.f32 %v451, %v1108
        %v1110 = vpop.f32.mrf.mxu0
        %v1111 = vadd.f32 %v451, %v1110
        %1112 = vmatmul.bf16.gmra.mxu0 %v398
        %v1113 = vpop.f32.mrf.mxu0
        %v1114 = vadd.f32 %v451, %v1113
        %v1115 = vpop.f32.mrf.mxu0
        %v1116 = vadd.f32 %v451, %v1115
        %1117 = vmatmul.bf16.gmra.mxu0 %v400
        %v1118 = vpop.f32.mrf.mxu0
        %v1119 = vadd.f32 %v451, %v1118
        %v1120 = vpop.f32.mrf.mxu0
        %v1121 = vadd.f32 %v451, %v1120
        %1122 = vmatmul.bf16.gmra.mxu0 %v402
        %v1123 = vpop.f32.mrf.mxu0
        %v1124 = vadd.f32 %v451, %v1123
        %v1125 = vpop.f32.mrf.mxu0
        %v1126 = vadd.f32 %v451, %v1125
        %1127 = vmatmul.bf16.gmra.mxu0 %v404
        %v1128 = vpop.f32.mrf.mxu0
        %v1129 = vadd.f32 %v451, %v1128
        %v1130 = vpop.f32.mrf.mxu0
        %v1131 = vadd.f32 %v451, %v1130
        %1132 = vmatmul.bf16.gmra.mxu0 %v406
        %v1133 = vpop.f32.mrf.mxu0
        %v1134 = vadd.f32 %v451, %v1133
        %v1135 = vpop.f32.mrf.mxu0
        %v1136 = vadd.f32 %v451, %v1135
        %1137 = vmatmul.bf16.gmra.mxu0 %v408
        %v1138 = vpop.f32.mrf.mxu0
        %v1139 = vadd.f32 %v451, %v1138
        %v1140 = vpop.f32.mrf.mxu0
        %v1141 = vadd.f32 %v451, %v1140
        %1142 = vmatmul.bf16.gmra.mxu0 %v410
        %v1143 = vpop.f32.mrf.mxu0
        %v1144 = vadd.f32 %v451, %v1143
        %v1145 = vpop.f32.mrf.mxu0
        %v1146 = vadd.f32 %v451, %v1145
        %1147 = vmatmul.bf16.gmra.mxu0 %v412
        %v1148 = vpop.f32.mrf.mxu0
        %v1149 = vadd.f32 %v451, %v1148
        %v1150 = vpop.f32.mrf.mxu0
        %v1151 = vadd.f32 %v451, %v1150
        %1152 = vmatmul.bf16.gmra.mxu0 %v414
        %v1153 = vpop.f32.mrf.mxu0
        %v1154 = vadd.f32 %v451, %v1153
        %v1155 = vpop.f32.mrf.mxu0
        %v1156 = vadd.f32 %v451, %v1155
        %1157 = vmatmul.bf16.gmra.mxu0 %v416
        %v1158 = vpop.f32.mrf.mxu0
        %v1159 = vadd.f32 %v451, %v1158
        %v1160 = vpop.f32.mrf.mxu0
        %v1161 = vadd.f32 %v451, %v1160
        %1162 = vmatmul.bf16.gmra.mxu0 %v418
        %v1163 = vpop.f32.mrf.mxu0
        %v1164 = vadd.f32 %v451, %v1163
        %v1165 = vpop.f32.mrf.mxu0
        %v1166 = vadd.f32 %v451, %v1165
        %1167 = vmatmul.bf16.gmra.mxu0 %v420
        %v1168 = vpop.f32.mrf.mxu0
        %v1169 = vadd.f32 %v451, %v1168
        %v1170 = vpop.f32.mrf.mxu0
        %v1171 = vadd.f32 %v451, %v1170
        %1172 = vmatmul.bf16.gmra.mxu0 %v422
        %v1173 = vpop.f32.mrf.mxu0
        %v1174 = vadd.f32 %v451, %v1173
        %v1175 = vpop.f32.mrf.mxu0
        %v1176 = vadd.f32 %v451, %v1175
        %1177 = vdwg.mxu0
        %1178 = vmatpush.bf16.msra.mxu0 0
        %1179 = vmatpush.bf16.msra.mxu0 0
        %1180 = vmatpush.bf16.msra.mxu0 0
        %1181 = vmatpush.bf16.msra.mxu0 0
        %1182 = vmatpush.bf16.msra.mxu0 %v549
        %1183 = vmatpush.bf16.msra.mxu0 %v547
        %1184 = vmatpush.bf16.msra.mxu0 %v545
        %1185 = vmatpush.bf16.msra.mxu0 %v543
        %1186 = vmatmul.bf16.gmra.mxu0 %v576
        %v1187 = vpop.f32.mrf.mxu0
        %v1188 = vadd.f32 %v1019, %v1187
        %v1189 = vpop.f32.mrf.mxu0
        %v1190 = vadd.f32 %v1021, %v1189
        %1191 = vmatmul.bf16.gmra.mxu0 %v579
        %v1192 = vpop.f32.mrf.mxu0
        %v1193 = vadd.f32 %v1024, %v1192
        %v1194 = vpop.f32.mrf.mxu0
        %v1195 = vadd.f32 %v1026, %v1194
        %1196 = vmatmul.bf16.gmra.mxu0 %v582
        %v1197 = vpop.f32.mrf.mxu0
        %v1198 = vadd.f32 %v1029, %v1197
        %v1199 = vpop.f32.mrf.mxu0
        %v1200 = vadd.f32 %v1031, %v1199
        %1201 = vmatmul.bf16.gmra.mxu0 %v585
        %v1202 = vpop.f32.mrf.mxu0
        %v1203 = vadd.f32 %v1034, %v1202
        %v1204 = vpop.f32.mrf.mxu0
        %v1205 = vadd.f32 %v1036, %v1204
        %1206 = vmatmul.bf16.gmra.mxu0 %v588
        %v1207 = vpop.f32.mrf.mxu0
        %v1208 = vadd.f32 %v1039, %v1207
        %v1209 = vpop.f32.mrf.mxu0
        %v1210 = vadd.f32 %v1041, %v1209
        %1211 = vmatmul.bf16.gmra.mxu0 %v591
        %v1212 = vpop.f32.mrf.mxu0
        %v1213 = vadd.f32 %v1044, %v1212
        %v1214 = vpop.f32.mrf.mxu0
        %v1215 = vadd.f32 %v1046, %v1214
        %1216 = vmatmul.bf16.gmra.mxu0 %v594
        %v1217 = vpop.f32.mrf.mxu0
        %v1218 = vadd.f32 %v1049, %v1217
        %v1219 = vpop.f32.mrf.mxu0
        %v1220 = vadd.f32 %v1051, %v1219
        %1221 = vmatmul.bf16.gmra.mxu0 %v597
        %v1222 = vpop.f32.mrf.mxu0
        %v1223 = vadd.f32 %v1054, %v1222
        %v1224 = vpop.f32.mrf.mxu0
        %v1225 = vadd.f32 %v1056, %v1224
        %1226 = vmatmul.bf16.gmra.mxu0 %v600
        %v1227 = vpop.f32.mrf.mxu0
        %v1228 = vadd.f32 %v1059, %v1227
        %v1229 = vpop.f32.mrf.mxu0
        %v1230 = vadd.f32 %v1061, %v1229
        %1231 = vmatmul.bf16.gmra.mxu0 %v603
        %v1232 = vpop.f32.mrf.mxu0
        %v1233 = vadd.f32 %v1064, %v1232
        %v1234 = vpop.f32.mrf.mxu0
        %v1235 = vadd.f32 %v1066, %v1234
        %1236 = vmatmul.bf16.gmra.mxu0 %v606
        %v1237 = vpop.f32.mrf.mxu0
        %v1238 = vadd.f32 %v1069, %v1237
        %v1239 = vpop.f32.mrf.mxu0
        %v1240 = vadd.f32 %v1071, %v1239
        %1241 = vmatmul.bf16.gmra.mxu0 %v609
        %v1242 = vpop.f32.mrf.mxu0
        %v1243 = vadd.f32 %v1074, %v1242
        %v1244 = vpop.f32.mrf.mxu0
        %v1245 = vadd.f32 %v1076, %v1244
        %1246 = vmatmul.bf16.gmra.mxu0 %v612
        %v1247 = vpop.f32.mrf.mxu0
        %v1248 = vadd.f32 %v1079, %v1247
        %v1249 = vpop.f32.mrf.mxu0
        %v1250 = vadd.f32 %v1081, %v1249
        %1251 = vmatmul.bf16.gmra.mxu0 %v615
        %v1252 = vpop.f32.mrf.mxu0
        %v1253 = vadd.f32 %v1084, %v1252
        %v1254 = vpop.f32.mrf.mxu0
        %v1255 = vadd.f32 %v1086, %v1254
        %1256 = vmatmul.bf16.gmra.mxu0 %v618
        %v1257 = vpop.f32.mrf.mxu0
        %v1258 = vadd.f32 %v1089, %v1257
        %v1259 = vpop.f32.mrf.mxu0
        %v1260 = vadd.f32 %v1091, %v1259
        %1261 = vmatmul.bf16.gmra.mxu0 %v621
        %v1262 = vpop.f32.mrf.mxu0
        %v1263 = vadd.f32 %v1094, %v1262
        %v1264 = vpop.f32.mrf.mxu0
        %v1265 = vadd.f32 %v1096, %v1264
        %1266 = vmatmul.bf16.gmra.mxu0 %v624
        %v1267 = vpop.f32.mrf.mxu0
        %v1268 = vadd.f32 %v1099, %v1267
        %v1269 = vpop.f32.mrf.mxu0
        %v1270 = vadd.f32 %v1101, %v1269
        %1271 = vmatmul.bf16.gmra.mxu0 %v627
        %v1272 = vpop.f32.mrf.mxu0
        %v1273 = vadd.f32 %v1104, %v1272
        %v1274 = vpop.f32.mrf.mxu0
        %v1275 = vadd.f32 %v1106, %v1274
        %1276 = vmatmul.bf16.gmra.mxu0 %v630
        %v1277 = vpop.f32.mrf.mxu0
        %v1278 = vadd.f32 %v1109, %v1277
        %v1279 = vpop.f32.mrf.mxu0
        %v1280 = vadd.f32 %v1111, %v1279
        %1281 = vmatmul.bf16.gmra.mxu0 %v633
        %v1282 = vpop.f32.mrf.mxu0
        %v1283 = vadd.f32 %v1114, %v1282
        %v1284 = vpop.f32.mrf.mxu0
        %v1285 = vadd.f32 %v1116, %v1284
        %1286 = vmatmul.bf16.gmra.mxu0 %v636
        %v1287 = vpop.f32.mrf.mxu0
        %v1288 = vadd.f32 %v1119, %v1287
        %v1289 = vpop.f32.mrf.mxu0
        %v1290 = vadd.f32 %v1121, %v1289
        %1291 = vmatmul.bf16.gmra.mxu0 %v639
        %v1292 = vpop.f32.mrf.mxu0
        %v1293 = vadd.f32 %v1124, %v1292
        %v1294 = vpop.f32.mrf.mxu0
        %v1295 = vadd.f32 %v1126, %v1294
        %1296 = vmatmul.bf16.gmra.mxu0 %v642
        %v1297 = vpop.f32.mrf.mxu0
        %v1298 = vadd.f32 %v1129, %v1297
        %v1299 = vpop.f32.mrf.mxu0
        %v1300 = vadd.f32 %v1131, %v1299
        %1301 = vmatmul.bf16.gmra.mxu0 %v645
        %v1302 = vpop.f32.mrf.mxu0
        %v1303 = vadd.f32 %v1134, %v1302
        %v1304 = vpop.f32.mrf.mxu0
        %v1305 = vadd.f32 %v1136, %v1304
        %1306 = vmatmul.bf16.gmra.mxu0 %v648
        %v1307 = vpop.f32.mrf.mxu0
        %v1308 = vadd.f32 %v1139, %v1307
        %v1309 = vpop.f32.mrf.mxu0
        %v1310 = vadd.f32 %v1141, %v1309
        %1311 = vmatmul.bf16.gmra.mxu0 %v651
        %v1312 = vpop.f32.mrf.mxu0
        %v1313 = vadd.f32 %v1144, %v1312
        %v1314 = vpop.f32.mrf.mxu0
        %v1315 = vadd.f32 %v1146, %v1314
        %1316 = vmatmul.bf16.gmra.mxu0 %v654
        %v1317 = vpop.f32.mrf.mxu0
        %v1318 = vadd.f32 %v1149, %v1317
        %v1319 = vpop.f32.mrf.mxu0
        %v1320 = vadd.f32 %v1151, %v1319
        %1321 = vmatmul.bf16.gmra.mxu0 %v657
        %v1322 = vpop.f32.mrf.mxu0
        %v1323 = vadd.f32 %v1154, %v1322
        %v1324 = vpop.f32.mrf.mxu0
        %v1325 = vadd.f32 %v1156, %v1324
        %1326 = vmatmul.bf16.gmra.mxu0 %v660
        %v1327 = vpop.f32.mrf.mxu0
        %v1328 = vadd.f32 %v1159, %v1327
        %v1329 = vpop.f32.mrf.mxu0
        %v1330 = vadd.f32 %v1161, %v1329
        %1331 = vmatmul.bf16.gmra.mxu0 %v663
        %v1332 = vpop.f32.mrf.mxu0
        %v1333 = vadd.f32 %v1164, %v1332
        %v1334 = vpop.f32.mrf.mxu0
        %v1335 = vadd.f32 %v1166, %v1334
        %1336 = vmatmul.bf16.gmra.mxu0 %v666
        %v1337 = vpop.f32.mrf.mxu0
        %v1338 = vadd.f32 %v1169, %v1337
        %v1339 = vpop.f32.mrf.mxu0
        %v1340 = vadd.f32 %v1171, %v1339
        %1341 = vmatmul.bf16.gmra.mxu0 %v669
        %v1342 = vpop.f32.mrf.mxu0
        %v1343 = vadd.f32 %v1174, %v1342
        %v1344 = vpop.f32.mrf.mxu0
        %v1345 = vadd.f32 %v1176, %v1344
        %1346 = vdwg.mxu0
        %1347 = vst [vmem:[%s210] sm:$0xff] %v850
        %1348 = vst [vmem:[%s210 + $0x8] sm:$0xff] %v1188
        %1349 = vst [vmem:[%s210 + $0x10] sm:$0xff] %v852
        %1350 = vst [vmem:[%s210 + $0x18] sm:$0xff] %v1190
        %1351 = vst [vmem:[%s210 + $0x20] sm:$0xff] %v855
        %1352 = vst [vmem:[%s210 + $0x28] sm:$0xff] %v1193
        %1353 = vst [vmem:[%s210 + $0x30] sm:$0xff] %v857
        %1354 = vst [vmem:[%s210 + $0x38] sm:$0xff] %v1195
        %1355 = vst [vmem:[%s210 + $0x40] sm:$0xff] %v860
        %1356 = vst [vmem:[%s210 + $0x48] sm:$0xff] %v1198
        %1357 = vst [vmem:[%s210 + $0x50] sm:$0xff] %v862
        %1358 = vst [vmem:[%s210 + $0x58] sm:$0xff] %v1200
        %1359 = vst [vmem:[%s210 + $0x60] sm:$0xff] %v865
        %1360 = vst [vmem:[%s210 + $0x68] sm:$0xff] %v1203
        %1361 = vst [vmem:[%s210 + $0x70] sm:$0xff] %v867
        %1362 = vst [vmem:[%s210 + $0x78] sm:$0xff] %v1205
        %1363 = vst [vmem:[%s210 + $0x80] sm:$0xff] %v870
        %1364 = vst [vmem:[%s210 + $0x88] sm:$0xff] %v1208
        %1365 = vst [vmem:[%s210 + $0x90] sm:$0xff] %v872
        %1366 = vst [vmem:[%s210 + $0x98] sm:$0xff] %v1210
        %1367 = vst [vmem:[%s210 + $0xa0] sm:$0xff] %v875
        %1368 = vst [vmem:[%s210 + $0xa8] sm:$0xff] %v1213
        %1369 = vst [vmem:[%s210 + $0xb0] sm:$0xff] %v877
        %1370 = vst [vmem:[%s210 + $0xb8] sm:$0xff] %v1215
        %1371 = vst [vmem:[%s210 + $0xc0] sm:$0xff] %v880
        %1372 = vst [vmem:[%s210 + $0xc8] sm:$0xff] %v1218
        %1373 = vst [vmem:[%s210 + $0xd0] sm:$0xff] %v882
        %1374 = vst [vmem:[%s210 + $0xd8] sm:$0xff] %v1220
        %1375 = vst [vmem:[%s210 + $0xe0] sm:$0xff] %v885
        %1376 = vst [vmem:[%s210 + $0xe8] sm:$0xff] %v1223
        %1377 = vst [vmem:[%s210 + $0xf0] sm:$0xff] %v887
        %1378 = vst [vmem:[%s210 + $0xf8] sm:$0xff] %v1225
        %1379 = vst [vmem:[%s210 + $0x100] sm:$0xff] %v890
        %1380 = vst [vmem:[%s210 + $0x108] sm:$0xff] %v1228
        %1381 = vst [vmem:[%s210 + $0x110] sm:$0xff] %v892
        %1382 = vst [vmem:[%s210 + $0x118] sm:$0xff] %v1230
        %1383 = vst [vmem:[%s210 + $0x120] sm:$0xff] %v895
        %1384 = vst [vmem:[%s210 + $0x128] sm:$0xff] %v1233
        %1385 = vst [vmem:[%s210 + $0x130] sm:$0xff] %v897
        %1386 = vst [vmem:[%s210 + $0x138] sm:$0xff] %v1235
        %1387 = vst [vmem:[%s210 + $0x140] sm:$0xff] %v900
        %1388 = vst [vmem:[%s210 + $0x148] sm:$0xff] %v1238
        %1389 = vst [vmem:[%s210 + $0x150] sm:$0xff] %v902
        %1390 = vst [vmem:[%s210 + $0x158] sm:$0xff] %v1240
        %1391 = vst [vmem:[%s210 + $0x160] sm:$0xff] %v905
        %1392 = vst [vmem:[%s210 + $0x168] sm:$0xff] %v1243
        %1393 = vst [vmem:[%s210 + $0x170] sm:$0xff] %v907
        %1394 = vst [vmem:[%s210 + $0x178] sm:$0xff] %v1245
        %1395 = vst [vmem:[%s210 + $0x180] sm:$0xff] %v910
        %1396 = vst [vmem:[%s210 + $0x188] sm:$0xff] %v1248
        %1397 = vst [vmem:[%s210 + $0x190] sm:$0xff] %v912
        %1398 = vst [vmem:[%s210 + $0x198] sm:$0xff] %v1250
        %1399 = vst [vmem:[%s210 + $0x1a0] sm:$0xff] %v915
        %1400 = vst [vmem:[%s210 + $0x1a8] sm:$0xff] %v1253
        %1401 = vst [vmem:[%s210 + $0x1b0] sm:$0xff] %v917
        %1402 = vst [vmem:[%s210 + $0x1b8] sm:$0xff] %v1255
        %1403 = vst [vmem:[%s210 + $0x1c0] sm:$0xff] %v920
        %1404 = vst [vmem:[%s210 + $0x1c8] sm:$0xff] %v1258
        %1405 = vst [vmem:[%s210 + $0x1d0] sm:$0xff] %v922
        %1406 = vst [vmem:[%s210 + $0x1d8] sm:$0xff] %v1260
        %1407 = vst [vmem:[%s210 + $0x1e0] sm:$0xff] %v925
        %1408 = vst [vmem:[%s210 + $0x1e8] sm:$0xff] %v1263
        %1409 = vst [vmem:[%s210 + $0x1f0] sm:$0xff] %v927
        %1410 = vst [vmem:[%s210 + $0x1f8] sm:$0xff] %v1265
        %1411 = vst [vmem:[%s210 + $0x200] sm:$0xff] %v930
        %1412 = vst [vmem:[%s210 + $0x208] sm:$0xff] %v1268
        %1413 = vst [vmem:[%s210 + $0x210] sm:$0xff] %v932
        %1414 = vst [vmem:[%s210 + $0x218] sm:$0xff] %v1270
        %1415 = vst [vmem:[%s210 + $0x220] sm:$0xff] %v935
        %1416 = vst [vmem:[%s210 + $0x228] sm:$0xff] %v1273
        %1417 = vst [vmem:[%s210 + $0x230] sm:$0xff] %v937
        %1418 = vst [vmem:[%s210 + $0x238] sm:$0xff] %v1275
        %1419 = vst [vmem:[%s210 + $0x240] sm:$0xff] %v940
        %1420 = vst [vmem:[%s210 + $0x248] sm:$0xff] %v1278
        %1421 = vst [vmem:[%s210 + $0x250] sm:$0xff] %v942
        %1422 = vst [vmem:[%s210 + $0x258] sm:$0xff] %v1280
        %1423 = vst [vmem:[%s210 + $0x260] sm:$0xff] %v945
        %1424 = vst [vmem:[%s210 + $0x268] sm:$0xff] %v1283
        %1425 = vst [vmem:[%s210 + $0x270] sm:$0xff] %v947
        %1426 = vst [vmem:[%s210 + $0x278] sm:$0xff] %v1285
        %1427 = vst [vmem:[%s210 + $0x280] sm:$0xff] %v950
        %1428 = vst [vmem:[%s210 + $0x288] sm:$0xff] %v1288
        %1429 = vst [vmem:[%s210 + $0x290] sm:$0xff] %v952
        %1430 = vst [vmem:[%s210 + $0x298] sm:$0xff] %v1290
        %1431 = vst [vmem:[%s210 + $0x2a0] sm:$0xff] %v955
        %1432 = vst [vmem:[%s210 + $0x2a8] sm:$0xff] %v1293
        %1433 = vst [vmem:[%s210 + $0x2b0] sm:$0xff] %v957
        %1434 = vst [vmem:[%s210 + $0x2b8] sm:$0xff] %v1295
        %1435 = vst [vmem:[%s210 + $0x2c0] sm:$0xff] %v960
        %1436 = vst [vmem:[%s210 + $0x2c8] sm:$0xff] %v1298
        %1437 = vst [vmem:[%s210 + $0x2d0] sm:$0xff] %v962
        %1438 = vst [vmem:[%s210 + $0x2d8] sm:$0xff] %v1300
        %1439 = vst [vmem:[%s210 + $0x2e0] sm:$0xff] %v965
        %1440 = vst [vmem:[%s210 + $0x2e8] sm:$0xff] %v1303
        %1441 = vst [vmem:[%s210 + $0x2f0] sm:$0xff] %v967
        %1442 = vst [vmem:[%s210 + $0x2f8] sm:$0xff] %v1305
        %1443 = vst [vmem:[%s210 + $0x300] sm:$0xff] %v970
        %1444 = vst [vmem:[%s210 + $0x308] sm:$0xff] %v1308
        %1445 = vst [vmem:[%s210 + $0x310] sm:$0xff] %v972
        %1446 = vst [vmem:[%s210 + $0x318] sm:$0xff] %v1310
        %1447 = vst [vmem:[%s210 + $0x320] sm:$0xff] %v975
        %1448 = vst [vmem:[%s210 + $0x328] sm:$0xff] %v1313
        %1449 = vst [vmem:[%s210 + $0x330] sm:$0xff] %v977
        %1450 = vst [vmem:[%s210 + $0x338] sm:$0xff] %v1315
        %1451 = vst [vmem:[%s210 + $0x340] sm:$0xff] %v980
        %1452 = vst [vmem:[%s210 + $0x348] sm:$0xff] %v1318
        %1453 = vst [vmem:[%s210 + $0x350] sm:$0xff] %v982
        %1454 = vst [vmem:[%s210 + $0x358] sm:$0xff] %v1320
        %1455 = vst [vmem:[%s210 + $0x360] sm:$0xff] %v985
        %1456 = vst [vmem:[%s210 + $0x368] sm:$0xff] %v1323
        %1457 = vst [vmem:[%s210 + $0x370] sm:$0xff] %v987
        %1458 = vst [vmem:[%s210 + $0x378] sm:$0xff] %v1325
        %1459 = vst [vmem:[%s210 + $0x380] sm:$0xff] %v990
        %1460 = vst [vmem:[%s210 + $0x388] sm:$0xff] %v1328
        %1461 = vst [vmem:[%s210 + $0x390] sm:$0xff] %v992
        %1462 = vst [vmem:[%s210 + $0x398] sm:$0xff] %v1330
        %1463 = vst [vmem:[%s210 + $0x3a0] sm:$0xff] %v995
        %1464 = vst [vmem:[%s210 + $0x3a8] sm:$0xff] %v1333
        %1465 = vst [vmem:[%s210 + $0x3b0] sm:$0xff] %v997
        %1466 = vst [vmem:[%s210 + $0x3b8] sm:$0xff] %v1335
        %1467 = vst [vmem:[%s210 + $0x3c0] sm:$0xff] %v1000
        %1468 = vst [vmem:[%s210 + $0x3c8] sm:$0xff] %v1338
        %1469 = vst [vmem:[%s210 + $0x3d0] sm:$0xff] %v1002
        %1470 = vst [vmem:[%s210 + $0x3d8] sm:$0xff] %v1340
        %1471 = vst [vmem:[%s210 + $0x3e0] sm:$0xff] %v1005
        %1472 = vst [vmem:[%s210 + $0x3e8] sm:$0xff] %v1343
        %1473 = vst [vmem:[%s210 + $0x3f0] sm:$0xff] %v1007
        %1474 = vst [vmem:[%s210 + $0x3f8] sm:$0xff] %v1345
        %s1475 = sand.u32 %s117, 1
        %s1476 = scalar_lea.sflag [#allocation3], %s1475
        %s1477 = sand.u32 %s117, 1
        %s1478 = smul.addr %s1477, 1024
        %s1479 = scalar_lea.vmem [#allocation2], %s1478
        // Predicated region
        $region33: #{tpu_custom_call.1} parent=31 // pred_check
          %p1480 = pneg %p127
        $region34: #{tpu_custom_call.1} parent=31 // pred_check_branch
          %1482 = sbr.rel (%p1480) target = $region36
        $region35: #{tpu_custom_call.1} parent=31 // pred_region
          %s1483 = smul.u32 64, %s21
          %s1484 = smul.u32 2, %s22
          %1486 = vsyncadd %s1476, 0
          %s1487 = smul.addr %s1483, 2
          %s1488 = sadd.s32 %s1484, %s1487
          %s1489 = smul.addr %s1488, 8
          %s1490 = scalar_lea.hbm %s3, %s1489
          %s1491 = sshll.u32 %s1479, 4
          %s1492 = int_to_ptr.vmem [resolvable:$true] %s1491
          %s1493 = sshll.u32 %s1490, 4
          %s1494 = int_to_ptr.hbm [resolvable:$true] %s1493
          %1499 = dma.vmem_to_hbm [thread:$0]  %s1492, 16384, %s1494, %s1476, 256, 256, 16
        $region36: #{tpu_custom_call.1} parent=31 // pred_fallthru
          _
      $region32: #{tpu_custom_call.1} parent=5 // pred_fallthru
        _
      %p1500 = scmp.le.s32.totalorder 2, %s12
      // Predicated region
      $region37: #{tpu_custom_call.1} parent=5 // pred_check
        %p1501 = pneg %p1500
      $region38: #{tpu_custom_call.1} parent=5 // pred_check_branch
        %1503 = sbr.rel (%p1501) target = $region40
      $region39: #{tpu_custom_call.1} parent=5 // pred_region
        %s1504 = ssub.s32 %s12, 2
        // Predicated region
        $region41: #{tpu_custom_call.1} parent=39 // pred_check
          %p1505 = pneg %p133
        $region42: #{tpu_custom_call.1} parent=39 // pred_check_branch
          %1507 = sbr.rel (%p1505) target = $region44
        $region43: #{tpu_custom_call.1} parent=39 // pred_region
          %s1508 = sand.u32 %s118, 1
          %s1509 = scalar_lea.sflag [#allocation3], %s1508
          %s1510 = sand.u32 %s118, 1
          %s1511 = smul.addr %s1510, 1024
          %s1512 = scalar_lea.vmem [#allocation2], %s1511
          %1514 = dma.done %s1509, 16384
        $region44: #{tpu_custom_call.1} parent=39 // pred_fallthru
          _
      $region40: #{tpu_custom_call.1} parent=5 // pred_fallthru
        _
    $region6: #{tpu_custom_call.1} parent=1 // loop_footer
      %s16 = sadd.s32 1, %s12
    $region7: #{tpu_custom_call.1} parent=1 // loop_footer_branch
      %11 = sbr.rel target = $region3
    $region8: #{tpu_custom_call.1} parent=1 // loop_exit
      _
    %1515 = vsyncpa [#allocation3], 1
    %s1516 = scalar_lea.sflag [#allocation3], 1
    %1517 = vsyncpa %s1516, 1

</llo_original>
